<compile_context>
chip_gen: v6e
topology: v6e:2x2x1
jax: 0.10.0
libtpu: 0.0.40
codegen_flags: <defaults>
</compile_context>

<pallas_src>
import functools

import jax
import jax.numpy as jnp
from jax.experimental import pallas as pl
from jax.experimental.pallas import tpu as pltpu


LANE = 128    # lane-dense padded output width (MXU / vreg lane width)


def mlp_kernel(x_ref,
               w1_ref, b1_ref,
               w2_ref, b2_ref,
               w3_ref, b3_ref,
               w4_ref, b4_ref,
               o_ref):
    """One (TM, *) batch tile: (Linear -> ReLU) x 3 -> Linear.

    Matmul inputs are bf16, accumulation is f32 on the MXU; bias add / ReLU
    run in f32 on the VPU.  x arrives f32 and is cast per-tile in-kernel.
    """
    bf16 = jnp.bfloat16

    h = jnp.dot(x_ref[...].astype(bf16), w1_ref[...],
                preferred_element_type=jnp.float32) + b1_ref[...]
    h = jnp.maximum(h, 0.0)

    h = jnp.dot(h.astype(bf16), w2_ref[...],
                preferred_element_type=jnp.float32) + b2_ref[...]
    h = jnp.maximum(h, 0.0)

    h = jnp.dot(h.astype(bf16), w3_ref[...],
                preferred_element_type=jnp.float32) + b3_ref[...]
    h = jnp.maximum(h, 0.0)

    h = jnp.dot(h.astype(bf16), w4_ref[...],
                preferred_element_type=jnp.float32) + b4_ref[...]

    o_ref[...] = h.astype(o_ref.dtype)


def prepare_params(params):
    """One-time weight prep, OUTSIDE the forward path.

    Casts weights to bf16 and pads the last layer to a lane-dense (128-wide)
    output so the kernel never emits masked stores.  Biases stay f32.
    """
    n_output = params["w4"].shape[1]
    n_out_pad = pl.cdiv(n_output, LANE) * LANE
    bf16 = jnp.bfloat16
    return {
        "w1": params["w1"].astype(bf16),
        "w2": params["w2"].astype(bf16),
        "w3": params["w3"].astype(bf16),
        "w4": jnp.pad(params["w4"],
                      ((0, 0), (0, n_out_pad - n_output))).astype(bf16),
        "b1": params["b1"],
        "b2": params["b2"],
        "b3": params["b3"],
        "b4": jnp.pad(params["b4"], ((0, 0), (0, n_out_pad - n_output))),
    }


@functools.partial(jax.jit, static_argnames=("n_output",))
def net_forward(x, prep, *, n_output):
    """Pallas forward. x: [B, n_feature] f32. prep: output of prepare_params."""
    B, n_feature = x.shape
    n_out_pad = prep["w4"].shape[1]

    # Tile height: fill the 256-wide MXU (v6e/v7x) when the batch allows, but
    # keep >=2 grid steps so both v7x TensorCores get work.  On v5e, TM=128
    # already fills the 128x128 MXU; larger TM only amortizes step overhead.
    b_pad128 = pl.cdiv(B, 128) * 128
    TM = max(128, min(256, ((b_pad128 // 2) // 128) * 128))
    B_pad = pl.cdiv(B, TM) * TM

    x_p = x if B_pad == B else jnp.pad(x, ((0, B_pad - B), (0, 0)))

    def tile_map(i):        # activation / output tiles march over the batch
        return (i, 0)

    def resident_map(i):    # weights & biases: same block every step (resident)
        return (0, 0)

    in_specs = [
        pl.BlockSpec((TM, n_feature), tile_map),
        pl.BlockSpec(prep["w1"].shape, resident_map),
        pl.BlockSpec(prep["b1"].shape, resident_map),
        pl.BlockSpec(prep["w2"].shape, resident_map),
        pl.BlockSpec(prep["b2"].shape, resident_map),
        pl.BlockSpec(prep["w3"].shape, resident_map),
        pl.BlockSpec(prep["b3"].shape, resident_map),
        pl.BlockSpec(prep["w4"].shape, resident_map),
        pl.BlockSpec(prep["b4"].shape, resident_map),
    ]

    out = pl.pallas_call(
        mlp_kernel,
        out_shape=jax.ShapeDtypeStruct((B_pad, n_out_pad), jnp.float32),
        grid=(B_pad // TM,),
        in_specs=in_specs,
        out_specs=pl.BlockSpec((TM, n_out_pad), tile_map),
        compiler_params=pltpu.CompilerParams(
            # batch steps are independent -> shard across TCs (v7x megacore)
            dimension_semantics=("parallel",),
        ),
    )(x_p, prep["w1"], prep["b1"], prep["w2"], prep["b2"],
      prep["w3"], prep["b3"], prep["w4"], prep["b4"])

    return out[:B, :n_output]


def init_params(key, n_feature, n_output):
    """Deterministic PyTorch-Linear-style init (uniform +/- 1/sqrt(fan_in))."""
    dims = [n_feature, 128, 256, 512, n_output]
    params = {}
    keys = jax.random.split(key, 8)
    for i in range(4):
        fan_in, fan_out = dims[i], dims[i + 1]
        bound = 1.0 / jnp.sqrt(jnp.float32(fan_in))
        # stored as [in, out] so kernel does x @ W
        params[f"w{i+1}"] = jax.random.uniform(
            keys[2 * i], (fan_in, fan_out), jnp.float32, -bound, bound)
        params[f"b{i+1}"] = jax.random.uniform(
            keys[2 * i + 1], (1, fan_out), jnp.float32, -bound, bound)
    return params


def net_forward_ref(x, params):
    """Plain-JAX reference with the same bf16-in / f32-accumulate recipe."""
    bf16 = jnp.bfloat16

    def lin(h, w, b):
        return jnp.dot(h.astype(bf16), w.astype(bf16),
                       preferred_element_type=jnp.float32) + b

    h = jnp.maximum(lin(x, params["w1"], params["b1"]), 0.0)
    h = jnp.maximum(lin(h, params["w2"], params["b2"]), 0.0)
    h = jnp.maximum(lin(h, params["w3"], params["b3"]), 0.0)
    return lin(h, params["w4"], params["b4"])


if __name__ == "__main__":
    n_feature, n_output, batch = 32, 16, 256   # batch spans 2 grid steps

    key = jax.random.PRNGKey(0)
    k_params, k_x = jax.random.split(key)
    params = init_params(k_params, n_feature, n_output)
    x = jax.random.normal(k_x, (batch, n_feature), jnp.float32)

    # One-time weight prep (bf16 cast + lane pad), hoisted out of the forward.
    prep = jax.tree_util.tree_map(jax.block_until_ready, prepare_params(params))

    out = jax.block_until_ready(net_forward(x, prep, n_output=n_output))
    ref = net_forward_ref(x, params)

    assert out.shape == (batch, n_output)
    assert jnp.allclose(out, ref, atol=1e-2, rtol=1e-2), \
        float(jnp.max(jnp.abs(out - ref)))

    print("KERNEL_OK")
</pallas_src>

<mosaic_0001>
module attributes {stable_mosaic.version = 11 : i64} {
  func.func @mlp_kernel(%arg0: i32, %arg1: memref<128x32xf32, #tpu.memory_space<vmem>>, %arg2: memref<32x128xbf16, #tpu.memory_space<vmem>>, %arg3: memref<1x128xf32, #tpu.memory_space<vmem>>, %arg4: memref<128x256xbf16, #tpu.memory_space<vmem>>, %arg5: memref<1x256xf32, #tpu.memory_space<vmem>>, %arg6: memref<256x512xbf16, #tpu.memory_space<vmem>>, %arg7: memref<1x512xf32, #tpu.memory_space<vmem>>, %arg8: memref<512x128xbf16, #tpu.memory_space<vmem>>, %arg9: memref<1x128xf32, #tpu.memory_space<vmem>>, %arg10: memref<128x128xf32, #tpu.memory_space<vmem>>) attributes {dimension_semantics = [#tpu.dimension_semantics<parallel>], iteration_bounds = array<i64: 2>, scalar_prefetch = 0 : i64, scratch_operands = 0 : i64, tpu.core_type = #tpu.core_type<tc>, window_params = [{transform_indices = @transform_0, window_bounds = array<i64: 128, 32>}, {pipeline_mode = #tpu.pipeline_mode<synchronous>, transform_indices = @transform_1, window_bounds = array<i64: 32, 128>}, {pipeline_mode = #tpu.pipeline_mode<synchronous>, transform_indices = @transform_2, window_bounds = array<i64: 1, 128>}, {pipeline_mode = #tpu.pipeline_mode<synchronous>, transform_indices = @transform_3, window_bounds = array<i64: 128, 256>}, {pipeline_mode = #tpu.pipeline_mode<synchronous>, transform_indices = @transform_4, window_bounds = array<i64: 1, 256>}, {pipeline_mode = #tpu.pipeline_mode<synchronous>, transform_indices = @transform_5, window_bounds = array<i64: 256, 512>}, {pipeline_mode = #tpu.pipeline_mode<synchronous>, transform_indices = @transform_6, window_bounds = array<i64: 1, 512>}, {pipeline_mode = #tpu.pipeline_mode<synchronous>, transform_indices = @transform_7, window_bounds = array<i64: 512, 128>}, {pipeline_mode = #tpu.pipeline_mode<synchronous>, transform_indices = @transform_8, window_bounds = array<i64: 1, 128>}, {transform_indices = @transform_9, window_bounds = array<i64: 128, 128>}]} {
    %c0 = arith.constant 0 : index
    %c0_0 = arith.constant 0 : index
    %0 = vector.load %arg1[%c0, %c0_0] : memref<128x32xf32, #tpu.memory_space<vmem>>, vector<128x32xf32>
    %1 = arith.truncf %0 : vector<128x32xf32> to vector<128x32xbf16>
    %c0_1 = arith.constant 0 : index
    %c0_2 = arith.constant 0 : index
    %2 = vector.load %arg2[%c0_1, %c0_2] : memref<32x128xbf16, #tpu.memory_space<vmem>>, vector<32x128xbf16>
    %cst = arith.constant dense<0.000000e+00> : vector<128x128xf32>
    %3 = tpu.matmul %1, %2, %cst {dimension_numbers = #tpu.dot_dimension_numbers<[1], [0], [0], [1], [0, 0, 1, 1], [], []>} : vector<128x32xbf16>, vector<32x128xbf16>, vector<128x128xf32> -> vector<128x128xf32>
    %c0_3 = arith.constant 0 : index
    %c0_4 = arith.constant 0 : index
    %4 = vector.load %arg3[%c0_3, %c0_4] : memref<1x128xf32, #tpu.memory_space<vmem>>, vector<1x128xf32>
    %5 = vector.broadcast %4 : vector<1x128xf32> to vector<128x128xf32>
    %6 = arith.addf %3, %5 : vector<128x128xf32>
    %cst_5 = arith.constant 0.000000e+00 : f32
    %7 = vector.broadcast %cst_5 : f32 to vector<128x128xf32>
    %8 = arith.maximumf %6, %7 : vector<128x128xf32>
    %9 = arith.truncf %8 : vector<128x128xf32> to vector<128x128xbf16>
    %c0_6 = arith.constant 0 : index
    %c0_7 = arith.constant 0 : index
    %10 = vector.load %arg4[%c0_6, %c0_7] : memref<128x256xbf16, #tpu.memory_space<vmem>>, vector<128x256xbf16>
    %cst_8 = arith.constant dense<0.000000e+00> : vector<128x256xf32>
    %11 = tpu.matmul %9, %10, %cst_8 {dimension_numbers = #tpu.dot_dimension_numbers<[1], [0], [0], [1], [0, 0, 1, 1], [], []>} : vector<128x128xbf16>, vector<128x256xbf16>, vector<128x256xf32> -> vector<128x256xf32>
    %c0_9 = arith.constant 0 : index
    %c0_10 = arith.constant 0 : index
    %12 = vector.load %arg5[%c0_9, %c0_10] : memref<1x256xf32, #tpu.memory_space<vmem>>, vector<1x256xf32>
    %13 = vector.broadcast %12 : vector<1x256xf32> to vector<128x256xf32>
    %14 = arith.addf %11, %13 : vector<128x256xf32>
    %cst_11 = arith.constant 0.000000e+00 : f32
    %15 = vector.broadcast %cst_11 : f32 to vector<128x256xf32>
    %16 = arith.maximumf %14, %15 : vector<128x256xf32>
    %17 = arith.truncf %16 : vector<128x256xf32> to vector<128x256xbf16>
    %c0_12 = arith.constant 0 : index
    %c0_13 = arith.constant 0 : index
    %18 = vector.load %arg6[%c0_12, %c0_13] : memref<256x512xbf16, #tpu.memory_space<vmem>>, vector<256x512xbf16>
    %cst_14 = arith.constant dense<0.000000e+00> : vector<128x512xf32>
    %19 = tpu.matmul %17, %18, %cst_14 {dimension_numbers = #tpu.dot_dimension_numbers<[1], [0], [0], [1], [0, 0, 1, 1], [], []>} : vector<128x256xbf16>, vector<256x512xbf16>, vector<128x512xf32> -> vector<128x512xf32>
    %c0_15 = arith.constant 0 : index
    %c0_16 = arith.constant 0 : index
    %20 = vector.load %arg7[%c0_15, %c0_16] : memref<1x512xf32, #tpu.memory_space<vmem>>, vector<1x512xf32>
    %21 = vector.broadcast %20 : vector<1x512xf32> to vector<128x512xf32>
    %22 = arith.addf %19, %21 : vector<128x512xf32>
    %cst_17 = arith.constant 0.000000e+00 : f32
    %23 = vector.broadcast %cst_17 : f32 to vector<128x512xf32>
    %24 = arith.maximumf %22, %23 : vector<128x512xf32>
    %25 = arith.truncf %24 : vector<128x512xf32> to vector<128x512xbf16>
    %c0_18 = arith.constant 0 : index
    %c0_19 = arith.constant 0 : index
    %26 = vector.load %arg8[%c0_18, %c0_19] : memref<512x128xbf16, #tpu.memory_space<vmem>>, vector<512x128xbf16>
    %cst_20 = arith.constant dense<0.000000e+00> : vector<128x128xf32>
    %27 = tpu.matmul %25, %26, %cst_20 {dimension_numbers = #tpu.dot_dimension_numbers<[1], [0], [0], [1], [0, 0, 1, 1], [], []>} : vector<128x512xbf16>, vector<512x128xbf16>, vector<128x128xf32> -> vector<128x128xf32>
    %c0_21 = arith.constant 0 : index
    %c0_22 = arith.constant 0 : index
    %28 = vector.load %arg9[%c0_21, %c0_22] : memref<1x128xf32, #tpu.memory_space<vmem>>, vector<1x128xf32>
    %29 = vector.broadcast %28 : vector<1x128xf32> to vector<128x128xf32>
    %30 = arith.addf %27, %29 : vector<128x128xf32>
    %c0_23 = arith.constant 0 : index
    %c0_24 = arith.constant 0 : index
    %31 = vector.load %arg10[%c0_23, %c0_24] : memref<128x128xf32, #tpu.memory_space<vmem>>, vector<128x128xf32>
    tpu.vector_store %arg10[%c0_23, %c0_24], %30 {strides = array<i32>} : memref<128x128xf32, #tpu.memory_space<vmem>>, vector<128x128xf32>,
    return
  }
  func.func @transform_0(%arg0: i32) -> (i32, i32) {
    %c0_i32 = arith.constant 0 : i32
    %c0_i32_0 = arith.constant 0 : i32
    return %arg0, %c0_i32 : i32, i32
  }
  func.func @transform_1(%arg0: i32) -> (i32, i32) {
    %c0_i32 = arith.constant 0 : i32
    %c0_i32_0 = arith.constant 0 : i32
    %c0_i32_1 = arith.constant 0 : i32
    return %c0_i32, %c0_i32_0 : i32, i32
  }
  func.func @transform_2(%arg0: i32) -> (i32, i32) {
    %c0_i32 = arith.constant 0 : i32
    %c0_i32_0 = arith.constant 0 : i32
    %c0_i32_1 = arith.constant 0 : i32
    return %c0_i32, %c0_i32_0 : i32, i32
  }
  func.func @transform_3(%arg0: i32) -> (i32, i32) {
    %c0_i32 = arith.constant 0 : i32
    %c0_i32_0 = arith.constant 0 : i32
    %c0_i32_1 = arith.constant 0 : i32
    return %c0_i32, %c0_i32_0 : i32, i32
  }
  func.func @transform_4(%arg0: i32) -> (i32, i32) {
    %c0_i32 = arith.constant 0 : i32
    %c0_i32_0 = arith.constant 0 : i32
    %c0_i32_1 = arith.constant 0 : i32
    return %c0_i32, %c0_i32_0 : i32, i32
  }
  func.func @transform_5(%arg0: i32) -> (i32, i32) {
    %c0_i32 = arith.constant 0 : i32
    %c0_i32_0 = arith.constant 0 : i32
    %c0_i32_1 = arith.constant 0 : i32
    return %c0_i32, %c0_i32_0 : i32, i32
  }
  func.func @transform_6(%arg0: i32) -> (i32, i32) {
    %c0_i32 = arith.constant 0 : i32
    %c0_i32_0 = arith.constant 0 : i32
    %c0_i32_1 = arith.constant 0 : i32
    return %c0_i32, %c0_i32_0 : i32, i32
  }
  func.func @transform_7(%arg0: i32) -> (i32, i32) {
    %c0_i32 = arith.constant 0 : i32
    %c0_i32_0 = arith.constant 0 : i32
    %c0_i32_1 = arith.constant 0 : i32
    return %c0_i32, %c0_i32_0 : i32, i32
  }
  func.func @transform_8(%arg0: i32) -> (i32, i32) {
    %c0_i32 = arith.constant 0 : i32
    %c0_i32_0 = arith.constant 0 : i32
    %c0_i32_1 = arith.constant 0 : i32
    return %c0_i32, %c0_i32_0 : i32, i32
  }
  func.func @transform_9(%arg0: i32) -> (i32, i32) {
    %c0_i32 = arith.constant 0 : i32
    %c0_i32_0 = arith.constant 0 : i32
    return %arg0, %c0_i32 : i32, i32
  }
}

</mosaic_0001>

<llo_original>
// kernel: net_forward.1
$region0: #{net_forward.1}
  #allocation0 [shape = 'u32[]', space=smem, size = 0x4, offset = 0x4, fixed_abs, tag = 'smem constant byte address 0x4 - core index']
  #allocation1 [shape = 'u32[144,128]{1,0:T(1,128)}', space=vmem, size = 0x12000, scoped, tag = 'internal scratch']
  %s0 = inlined_call_operand.vmem [shape: f32[256,32], index: 0, kind: input, shape index: {}]
  %s1 = inlined_call_operand.vmem [shape: bf16[32,128], index: 1, kind: input, shape index: {}]
  %s2 = inlined_call_operand.vmem [shape: f32[1,128], index: 2, kind: input, shape index: {}]
  %s3 = inlined_call_operand.hbm [shape: bf16[128,256], index: 3, kind: input, shape index: {}]
  %s4 = inlined_call_operand.vmem [shape: f32[1,256], index: 4, kind: input, shape index: {}]
  %s5 = inlined_call_operand.hbm [shape: bf16[256,512], index: 5, kind: input, shape index: {}]
  %s6 = inlined_call_operand.vmem [shape: f32[1,512], index: 6, kind: input, shape index: {}]
  %s7 = inlined_call_operand.vmem [shape: bf16[512,128], index: 7, kind: input, shape index: {}]
  %s8 = inlined_call_operand.vmem [shape: f32[1,128], index: 8, kind: input, shape index: {}]
  %s9 = inlined_call_operand.vmem [shape: f32[256,128], index: 9, kind: output, shape index: {}]
  %s10 = sld [smem:[#allocation0]]
  $region77: #{net_forward.1} parent=0
    _
  %s12 = ssub.s32 1, %s10
  %s13 = scalar_select 0, %s12, %s10
  $region1: #{net_forward.1} parent=0
    #allocation2 [shape = 'u8[65536]{0}', space=vmem, size = 0x10000, scoped, tag = 'input window, operand 3, single buffered']
    #allocation3 [shape = 's32[2]{0}', space=sflag, size = 0x8, scoped, tag = 'scoped memory for net_forward.1']
    #allocation4 [shape = 'u8[262144]{0}', space=vmem, size = 0x40000, scoped, tag = 'input window, operand 5, single buffered']
    #allocation5 [shape = 's32[1]{0}', space=sflag, size = 0x4, scoped, tag = 'scoped memory for net_forward.1']
    %14 = vsyncpa [#allocation3], 0
    %15 = vsyncpa [#allocation5], 0
    loop: start=0, step=1, limit=4
    $region2: #{net_forward.1} parent=1 // loop_pre_header
      _
    $region3: #{net_forward.1} parent=1 // loop_header
      %s17 = sphi 0, %s21
      %p18 = scmp.ge.s32.totalorder %s17, 4
      %s27 = sphi 0, %s29
      %s30 = sphi 0, %s27
      %s31 = sphi 0, %s30
      %s47 = sphi 0, %s31
      %s51 = sphi 0, %s51
      %s53 = sphi 0, %s51
      %s54 = sphi 0, %s53
      %s68 = sphi 0, %s54
      %s72 = sphi 0, %s72
      %s74 = sphi 0, %s72
      %s75 = sphi 0, %s74
      %s89 = sphi 0, %s75
      %s93 = sphi 0, %s93
      %s95 = sphi 0, %s93
      %s96 = sphi 0, %s95
      %s110 = sphi 0, %s96
      %s114 = sphi 0, %s114
      %s116 = sphi 0, %s114
      %s117 = sphi 0, %s116
      %s131 = sphi 0, %s117
      %s135 = sphi 0, %s135
      %s137 = sphi 0, %s135
      %s138 = sphi 0, %s137
      %s152 = sphi 0, %s138
      %s156 = sphi 0, %s156
      %s158 = sphi 0, %s156
      %s159 = sphi 0, %s158
      %s173 = sphi 0, %s159
      %s177 = sphi 0, %s177
      %s179 = sphi 0, %s177
      %s180 = sphi 0, %s179
      %s194 = sphi 0, %s180
      %s198 = sphi 0, %s198
      %s200 = sphi 0, %s198
      %s201 = sphi 0, %s200
      %s215 = sphi 0, %s201
      %s221 = sphi 0, %s223
      %s224 = sphi 0, %s221
      %s225 = sphi 0, %s224
      %s241 = sphi 0, %s225
    $region4: #{net_forward.1} parent=1 // loop_header_branch
      %20 = sbr.rel (%p18) target = $region8
    $region5: #{net_forward.1} parent=1 // loop_body
      %s22 = ssub.s32 %s17, 1
      %s23 = ssub.s32 %s17, 2
      %s24 = sadd.s32 %s17, 1
      %s25 = ssub.s32 %s17, %s24
      %p26 = scmp.eq.s32.totalorder %s25, 0
      %s28 = sadd.s32 %s27, 1
      %s29 = scalar_select %p26, %s27, %s28
      %p32 = pneg %p26
      %p33 = scmp.eq.s32.totalorder %s17, 1
      %p34 = por %p32, %p33
      %p35 = scmp.ne.s32.totalorder %s27, %s30
      %p36 = scmp.eq.s32.totalorder %s17, 0
      %p37 = por %p35, %p36
      %p38 = scmp.ne.s32.totalorder %s27, %s30
      %p39 = scmp.eq.s32.totalorder %s22, 1
      %p40 = por %p38, %p39
      %p41 = scmp.ne.s32.totalorder %s30, %s31
      %p42 = scmp.eq.s32.totalorder %s22, 0
      %p43 = por %p41, %p42
      %p44 = scmp.ne.s32.totalorder %s30, %s31
      %p45 = scmp.eq.s32.totalorder %s23, 1
      %p46 = por %p44, %p45
      %p48 = scmp.ne.s32.totalorder %s31, %s47
      %p49 = scmp.eq.s32.totalorder %s23, 0
      %p50 = por %p48, %p49
      %s52 = sadd.s32 %s51, 1
      %p55 = scmp.eq.s32.totalorder %s17, 1
      %p56 = scmp.ne.s32.totalorder %s51, %s53
      %p57 = scmp.eq.s32.totalorder %s17, 0
      %p58 = por %p56, %p57
      %p59 = scmp.ne.s32.totalorder %s51, %s53
      %p60 = scmp.eq.s32.totalorder %s22, 1
      %p61 = por %p59, %p60
      %p62 = scmp.ne.s32.totalorder %s53, %s54
      %p63 = scmp.eq.s32.totalorder %s22, 0
      %p64 = por %p62, %p63
      %p65 = scmp.ne.s32.totalorder %s53, %s54
      %p66 = scmp.eq.s32.totalorder %s23, 1
      %p67 = por %p65, %p66
      %p69 = scmp.ne.s32.totalorder %s54, %s68
      %p70 = scmp.eq.s32.totalorder %s23, 0
      %p71 = por %p69, %p70
      %s73 = sadd.s32 %s72, 1
      %p76 = scmp.eq.s32.totalorder %s17, 1
      %p77 = scmp.ne.s32.totalorder %s72, %s74
      %p78 = scmp.eq.s32.totalorder %s17, 0
      %p79 = por %p77, %p78
      %p80 = scmp.ne.s32.totalorder %s72, %s74
      %p81 = scmp.eq.s32.totalorder %s22, 1
      %p82 = por %p80, %p81
      %p83 = scmp.ne.s32.totalorder %s74, %s75
      %p84 = scmp.eq.s32.totalorder %s22, 0
      %p85 = por %p83, %p84
      %p86 = scmp.ne.s32.totalorder %s74, %s75
      %p87 = scmp.eq.s32.totalorder %s23, 1
      %p88 = por %p86, %p87
      %p90 = scmp.ne.s32.totalorder %s75, %s89
      %p91 = scmp.eq.s32.totalorder %s23, 0
      %p92 = por %p90, %p91
      %s94 = sadd.s32 %s93, 1
      %p97 = scmp.eq.s32.totalorder %s17, 1
      %p98 = scmp.ne.s32.totalorder %s93, %s95
      %p99 = scmp.eq.s32.totalorder %s17, 0
      %p100 = por %p98, %p99
      %p101 = scmp.ne.s32.totalorder %s93, %s95
      %p102 = scmp.eq.s32.totalorder %s22, 1
      %p103 = por %p101, %p102
      %p104 = scmp.ne.s32.totalorder %s95, %s96
      %p105 = scmp.eq.s32.totalorder %s22, 0
      %p106 = por %p104, %p105
      %p107 = scmp.ne.s32.totalorder %s95, %s96
      %p108 = scmp.eq.s32.totalorder %s23, 1
      %p109 = por %p107, %p108
      %p111 = scmp.ne.s32.totalorder %s96, %s110
      %p112 = scmp.eq.s32.totalorder %s23, 0
      %p113 = por %p111, %p112
      %s115 = sadd.s32 %s114, 1
      %p118 = scmp.eq.s32.totalorder %s17, 1
      %p119 = scmp.ne.s32.totalorder %s114, %s116
      %p120 = scmp.eq.s32.totalorder %s17, 0
      %p121 = por %p119, %p120
      %p122 = scmp.ne.s32.totalorder %s114, %s116
      %p123 = scmp.eq.s32.totalorder %s22, 1
      %p124 = por %p122, %p123
      %p125 = scmp.ne.s32.totalorder %s116, %s117
      %p126 = scmp.eq.s32.totalorder %s22, 0
      %p127 = por %p125, %p126
      %p128 = scmp.ne.s32.totalorder %s116, %s117
      %p129 = scmp.eq.s32.totalorder %s23, 1
      %p130 = por %p128, %p129
      %p132 = scmp.ne.s32.totalorder %s117, %s131
      %p133 = scmp.eq.s32.totalorder %s23, 0
      %p134 = por %p132, %p133
      %s136 = sadd.s32 %s135, 1
      %p139 = scmp.eq.s32.totalorder %s17, 1
      %p140 = scmp.ne.s32.totalorder %s135, %s137
      %p141 = scmp.eq.s32.totalorder %s17, 0
      %p142 = por %p140, %p141
      %p143 = scmp.ne.s32.totalorder %s135, %s137
      %p144 = scmp.eq.s32.totalorder %s22, 1
      %p145 = por %p143, %p144
      %p146 = scmp.ne.s32.totalorder %s137, %s138
      %p147 = scmp.eq.s32.totalorder %s22, 0
      %p148 = por %p146, %p147
      %p149 = scmp.ne.s32.totalorder %s137, %s138
      %p150 = scmp.eq.s32.totalorder %s23, 1
      %p151 = por %p149, %p150
      %p153 = scmp.ne.s32.totalorder %s138, %s152
      %p154 = scmp.eq.s32.totalorder %s23, 0
      %p155 = por %p153, %p154
      %s157 = sadd.s32 %s156, 1
      %p160 = scmp.eq.s32.totalorder %s17, 1
      %p161 = scmp.ne.s32.totalorder %s156, %s158
      %p162 = scmp.eq.s32.totalorder %s17, 0
      %p163 = por %p161, %p162
      %p164 = scmp.ne.s32.totalorder %s156, %s158
      %p165 = scmp.eq.s32.totalorder %s22, 1
      %p166 = por %p164, %p165
      %p167 = scmp.ne.s32.totalorder %s158, %s159
      %p168 = scmp.eq.s32.totalorder %s22, 0
      %p169 = por %p167, %p168
      %p170 = scmp.ne.s32.totalorder %s158, %s159
      %p171 = scmp.eq.s32.totalorder %s23, 1
      %p172 = por %p170, %p171
      %p174 = scmp.ne.s32.totalorder %s159, %s173
      %p175 = scmp.eq.s32.totalorder %s23, 0
      %p176 = por %p174, %p175
      %s178 = sadd.s32 %s177, 1
      %p181 = scmp.eq.s32.totalorder %s17, 1
      %p182 = scmp.ne.s32.totalorder %s177, %s179
      %p183 = scmp.eq.s32.totalorder %s17, 0
      %p184 = por %p182, %p183
      %p185 = scmp.ne.s32.totalorder %s177, %s179
      %p186 = scmp.eq.s32.totalorder %s22, 1
      %p187 = por %p185, %p186
      %p188 = scmp.ne.s32.totalorder %s179, %s180
      %p189 = scmp.eq.s32.totalorder %s22, 0
      %p190 = por %p188, %p189
      %p191 = scmp.ne.s32.totalorder %s179, %s180
      %p192 = scmp.eq.s32.totalorder %s23, 1
      %p193 = por %p191, %p192
      %p195 = scmp.ne.s32.totalorder %s180, %s194
      %p196 = scmp.eq.s32.totalorder %s23, 0
      %p197 = por %p195, %p196
      %s199 = sadd.s32 %s198, 1
      %p202 = scmp.eq.s32.totalorder %s17, 1
      %p203 = scmp.ne.s32.totalorder %s198, %s200
      %p204 = scmp.eq.s32.totalorder %s17, 0
      %p205 = por %p203, %p204
      %p206 = scmp.ne.s32.totalorder %s198, %s200
      %p207 = scmp.eq.s32.totalorder %s22, 1
      %p208 = por %p206, %p207
      %p209 = scmp.ne.s32.totalorder %s200, %s201
      %p210 = scmp.eq.s32.totalorder %s22, 0
      %p211 = por %p209, %p210
      %p212 = scmp.ne.s32.totalorder %s200, %s201
      %p213 = scmp.eq.s32.totalorder %s23, 1
      %p214 = por %p212, %p213
      %p216 = scmp.ne.s32.totalorder %s201, %s215
      %p217 = scmp.eq.s32.totalorder %s23, 0
      %p218 = por %p216, %p217
      %s219 = ssub.s32 %s17, %s24
      %p220 = scmp.eq.s32.totalorder %s219, 0
      %s222 = sadd.s32 %s221, 1
      %s223 = scalar_select %p220, %s221, %s222
      %p226 = pneg %p220
      %p227 = scmp.eq.s32.totalorder %s17, 1
      %p228 = por %p226, %p227
      %p229 = scmp.ne.s32.totalorder %s221, %s224
      %p230 = scmp.eq.s32.totalorder %s17, 0
      %p231 = por %p229, %p230
      %p232 = scmp.ne.s32.totalorder %s221, %s224
      %p233 = scmp.eq.s32.totalorder %s22, 1
      %p234 = por %p232, %p233
      %p235 = scmp.ne.s32.totalorder %s224, %s225
      %p236 = scmp.eq.s32.totalorder %s22, 0
      %p237 = por %p235, %p236
      %p238 = scmp.ne.s32.totalorder %s224, %s225
      %p239 = scmp.eq.s32.totalorder %s23, 1
      %p240 = por %p238, %p239
      %p242 = scmp.ne.s32.totalorder %s225, %s241
      %p243 = scmp.eq.s32.totalorder %s23, 0
      %p244 = por %p242, %p243
      %p245 = scmp.le.s32.totalorder 1, %s17
      %p246 = scmp.lt.s32.totalorder %s17, 3
      %p247 = pnand %p245, %p246
      %p248 = pneg %p247
      // Predicated region
      $region9: #{net_forward.1} parent=5 // pred_check
        _
      $region10: #{net_forward.1} parent=5 // pred_check_branch
        %250 = sbr.rel (%p247) target = $region12
      $region11: #{net_forward.1} parent=5 // pred_region
        %s251 = ssub.s32 %s17, 1
        // Predicated region
        $region13: #{net_forward.1} parent=11 // pred_check
          %p252 = pneg %p64
        $region14: #{net_forward.1} parent=11 // pred_check_branch
          %254 = sbr.rel (%p252) target = $region16
        $region15: #{net_forward.1} parent=11 // pred_region
          _
        $region16: #{net_forward.1} parent=11 // pred_fallthru
          _
        // Predicated region
        $region17: #{net_forward.1} parent=11 // pred_check
          %p255 = pneg %p85
        $region18: #{net_forward.1} parent=11 // pred_check_branch
          %257 = sbr.rel (%p255) target = $region20
        $region19: #{net_forward.1} parent=11 // pred_region
          _
        $region20: #{net_forward.1} parent=11 // pred_fallthru
          _
        // Predicated region
        $region21: #{net_forward.1} parent=11 // pred_check
          %p258 = pneg %p106
        $region22: #{net_forward.1} parent=11 // pred_check_branch
          %260 = sbr.rel (%p258) target = $region24
        $region23: #{net_forward.1} parent=11 // pred_region
          %s262 = ssub.s32 2048, 2048
          %263 = vsyncadd [#allocation3], %s262
          %s264 = sshll.u32 [#allocation2], 4
          %s265 = int_to_ptr.vmem [resolvable:$true] %s264
          %270 = dma.hbm_to_vmem [thread:$0]  %s3, 2048, %s265, [#allocation3], 128, 128, 8
        $region24: #{net_forward.1} parent=11 // pred_fallthru
          _
        // Predicated region
        $region25: #{net_forward.1} parent=11 // pred_check
          %p271 = pneg %p127
        $region26: #{net_forward.1} parent=11 // pred_check_branch
          %273 = sbr.rel (%p271) target = $region28
        $region27: #{net_forward.1} parent=11 // pred_region
          _
        $region28: #{net_forward.1} parent=11 // pred_fallthru
          _
        // Predicated region
        $region29: #{net_forward.1} parent=11 // pred_check
          %p274 = pneg %p148
        $region30: #{net_forward.1} parent=11 // pred_check_branch
          %276 = sbr.rel (%p274) target = $region32
        $region31: #{net_forward.1} parent=11 // pred_region
          %s278 = ssub.s32 8192, 8192
          %279 = vsyncadd [#allocation5], %s278
          %s280 = sshll.u32 [#allocation4], 4
          %s281 = int_to_ptr.vmem [resolvable:$true] %s280
          %286 = dma.hbm_to_vmem [thread:$0]  %s5, 8192, %s281, [#allocation5], 256, 256, 16
        $region32: #{net_forward.1} parent=11 // pred_fallthru
          _
        // Predicated region
        $region33: #{net_forward.1} parent=11 // pred_check
          %p287 = pneg %p169
        $region34: #{net_forward.1} parent=11 // pred_check_branch
          %289 = sbr.rel (%p287) target = $region36
        $region35: #{net_forward.1} parent=11 // pred_region
          _
        $region36: #{net_forward.1} parent=11 // pred_fallthru
          _
        // Predicated region
        $region37: #{net_forward.1} parent=11 // pred_check
          %p290 = pneg %p190
        $region38: #{net_forward.1} parent=11 // pred_check_branch
          %292 = sbr.rel (%p290) target = $region40
        $region39: #{net_forward.1} parent=11 // pred_region
          _
        $region40: #{net_forward.1} parent=11 // pred_fallthru
          _
        // Predicated region
        $region41: #{net_forward.1} parent=11 // pred_check
          %p293 = pneg %p211
        $region42: #{net_forward.1} parent=11 // pred_check_branch
          %295 = sbr.rel (%p293) target = $region44
        $region43: #{net_forward.1} parent=11 // pred_region
          _
        $region44: #{net_forward.1} parent=11 // pred_fallthru
          _
      $region12: #{net_forward.1} parent=5 // pred_fallthru
        _
      %p296 = scmp.lt.s32.totalorder %s17, 2
      // Predicated region
      $region45: #{net_forward.1} parent=5 // pred_check
        %p297 = pneg %p296
      $region46: #{net_forward.1} parent=5 // pred_check_branch
        %299 = sbr.rel (%p297) target = $region48
      $region47: #{net_forward.1} parent=5 // pred_region
        // Predicated region
        $region49: #{net_forward.1} parent=47 // pred_check
          %p300 = pneg %p37
        $region50: #{net_forward.1} parent=47 // pred_check_branch
          %302 = sbr.rel (%p300) target = $region52
        $region51: #{net_forward.1} parent=47 // pred_region
          %s303 = smul.u32 16, %s17
          %p304 = scmp.lt.s32.totalorder %s303, 31
          %s305 = scalar_select %p304, %s303, 31
          %s306 = smul.addr %s305, 8
          %s307 = scalar_lea.vmem %s0, %s306
          %s308 = smul.u32 16, %s17
        $region52: #{net_forward.1} parent=47 // pred_fallthru
          _
      $region48: #{net_forward.1} parent=5 // pred_fallthru
        _
      %p309 = scmp.le.s32.totalorder 1, %s17
      %p310 = scmp.lt.s32.totalorder %s17, 3
      %p311 = pnand %p309, %p310
      %p312 = pneg %p311
      // Predicated region
      $region53: #{net_forward.1} parent=5 // pred_check
        _
      $region54: #{net_forward.1} parent=5 // pred_check_branch
        %314 = sbr.rel (%p311) target = $region56
      $region55: #{net_forward.1} parent=5 // pred_region
        %s315 = ssub.s32 %s17, 1
        // Predicated region
        $region57: #{net_forward.1} parent=55 // pred_check
          %p316 = pneg %p106
        $region58: #{net_forward.1} parent=55 // pred_check_branch
          %318 = sbr.rel (%p316) target = $region60
        $region59: #{net_forward.1} parent=55 // pred_region
          %319 = dma.done [#allocation3], 2048
        $region60: #{net_forward.1} parent=55 // pred_fallthru
          _
        // Predicated region
        $region61: #{net_forward.1} parent=55 // pred_check
          %p320 = pneg %p148
        $region62: #{net_forward.1} parent=55 // pred_check_branch
          %322 = sbr.rel (%p320) target = $region64
        $region63: #{net_forward.1} parent=55 // pred_region
          %323 = dma.done [#allocation5], 8192
        $region64: #{net_forward.1} parent=55 // pred_fallthru
          _
        %s324 = smul.u32 16, %s22
        %p325 = scmp.lt.s32.totalorder %s324, 31
        %s326 = scalar_select %p325, %s324, 31
        %s327 = smul.addr %s326, 8
        %s328 = scalar_lea.vmem %s0, %s327
        %p329 = pneg %p43
        %p330 = pneg %p40
        %p331 = pneg %p64
        %p332 = pneg %p61
        %p333 = pneg %p85
        %p334 = pneg %p82
        %p335 = pneg %p106
        %p336 = pneg %p103
        %p337 = pneg %p127
        %p338 = pneg %p124
        %p339 = pneg %p148
        %p340 = pneg %p145
        %p341 = pneg %p169
        %p342 = pneg %p166
        %p343 = pneg %p190
        %p344 = pneg %p187
        %p345 = pneg %p211
        %p346 = pneg %p208
        %p347 = pneg %p237
        %p348 = pneg %p234
        %s349 = smul.u32 16, %s22
        %p350 = scmp.lt.s32.totalorder %s349, 31
        %s351 = scalar_select %p350, %s349, 31
        %s352 = smul.addr %s351, 8
        %s353 = scalar_lea.vmem %s9, %s352
        %s354 = smul.u32 16, %s22
        %p355 = scmp.lt.s32.totalorder %s354, 31
        %s356 = scalar_select %p355, %s354, 31
        %s357 = smul.addr %s356, 8
        %s358 = scalar_lea.vmem %s0, %s357
        %s359 = smul.u32 16, %s22
        %s360 = smul.u32 16, %s22
        %p361 = scmp.lt.s32.totalorder %s360, 31
        %s362 = scalar_select %p361, %s360, 31
        %s363 = smul.addr %s362, 8
        %s364 = scalar_lea.vmem %s9, %s363
        %s365 = smul.u32 16, %s22
        %v367 = vld [vmem:[%s358] sm:$0xff]
        %v368 = vld [vmem:[%s358 + $0x8] sm:$0xff]
        %v369 = vld [vmem:[%s358 + $0x10] sm:$0xff]
        %v370 = vld [vmem:[%s358 + $0x18] sm:$0xff]
        %v371 = vld [vmem:[%s358 + $0x20] sm:$0xff]
        %v372 = vld [vmem:[%s358 + $0x28] sm:$0xff]
        %v373 = vld [vmem:[%s358 + $0x30] sm:$0xff]
        %v374 = vld [vmem:[%s358 + $0x38] sm:$0xff]
        %v375 = vld [vmem:[%s358 + $0x40] sm:$0xff]
        %v376 = vld [vmem:[%s358 + $0x48] sm:$0xff]
        %v377 = vld [vmem:[%s358 + $0x50] sm:$0xff]
        %v378 = vld [vmem:[%s358 + $0x58] sm:$0xff]
        %v379 = vld [vmem:[%s358 + $0x60] sm:$0xff]
        %v380 = vld [vmem:[%s358 + $0x68] sm:$0xff]
        %v381 = vld [vmem:[%s358 + $0x70] sm:$0xff]
        %v382 = vld [vmem:[%s358 + $0x78] sm:$0xff]
        %v383 = vpack.c.bf16 %v368, %v367
        %v384 = vpack.c.bf16 %v370, %v369
        %v385 = vpack.c.bf16 %v372, %v371
        %v386 = vpack.c.bf16 %v374, %v373
        %v387 = vpack.c.bf16 %v376, %v375
        %v388 = vpack.c.bf16 %v378, %v377
        %v389 = vpack.c.bf16 %v380, %v379
        %v390 = vpack.c.bf16 %v382, %v381
        %v391 = vld [vmem:[%s1] sm:$0xf]
        %v392 = vld [vmem:[%s1 + $0x4] sm:$0xf]
        %v393 = vld [vmem:[%s1 + $0x8] sm:$0xf]
        %v394 = vld [vmem:[%s1 + $0xc] sm:$0xf]
        %v395 = vld [vmem:[%s2] sm:$0x1]
        %v397 = vlaneseq
        %v398 = vshrl.u32 %v397, 7
        %v399 = vsub.s32 0, %v398
        %v400 = vrot.slane %v395, %v399
        %v406 = vunpack.c.l.b16 %v391
        %v407 = vunpack.c.l.b16 %v392
        %v408 = vunpack.c.l.b16 %v393
        %v409 = vunpack.c.l.b16 %v394
        %v410 = vpack.c.b16 %v407, %v406
        %v411 = vpack.c.b16 %v409, %v408
        %vm414 = vcmask 261120
        %v416 = vsel %vm414, %v383, 0
        %v419 = vsel %vm414, %v384, 0
        %v422 = vsel %vm414, %v385, 0
        %v425 = vsel %vm414, %v386, 0
        %v428 = vsel %vm414, %v387, 0
        %v431 = vsel %vm414, %v388, 0
        %v434 = vsel %vm414, %v389, 0
        %v437 = vsel %vm414, %v390, 0
        %439 = vmatprep.subr.bf16.mxu0 0
        %440 = vmatpush1.bf16.msra.mxu0 0
        %441 = vmatprep.subr.bf16.mxu0 0
        %442 = vmatpush1.bf16.msra.mxu0 0
        %443 = vmatprep.subr.bf16.mxu0 0
        %444 = vmatpush1.bf16.msra.mxu0 0
        %445 = vmatprep.subr.bf16.mxu0 0
        %446 = vmatpush1.bf16.msra.mxu0 0
        %447 = vmatprep.subr.bf16.mxu0 0
        %448 = vmatpush1.bf16.msra.mxu0 0
        %449 = vmatprep.subr.bf16.mxu0 0
        %450 = vmatpush1.bf16.msra.mxu0 0
        %451 = vmatprep.subr.bf16.mxu0 0
        %452 = vmatpush1.bf16.msra.mxu0 %v411
        %453 = vmatprep.subr.bf16.mxu0 0
        %454 = vmatpush1.bf16.msra.mxu0 %v410
        %455 = vmatprep.subr.bf16.mxu0 0
        %456 = vmatpush2.bf16.msra.mxu0 0
        %457 = vmatprep.subr.bf16.mxu0 0
        %458 = vmatpush2.bf16.msra.mxu0 0
        %459 = vmatprep.subr.bf16.mxu0 0
        %460 = vmatpush2.bf16.msra.mxu0 0
        %461 = vmatprep.subr.bf16.mxu0 0
        %462 = vmatpush2.bf16.msra.mxu0 0
        %463 = vmatprep.subr.bf16.mxu0 0
        %464 = vmatpush2.bf16.msra.mxu0 0
        %465 = vmatprep.subr.bf16.mxu0 0
        %466 = vmatpush2.bf16.msra.mxu0 0
        %467 = vmatprep.subr.bf16.mxu0 0
        %468 = vmatpush2.bf16.msra.mxu0 0
        %469 = vmatprep.subr.bf16.mxu0 0
        %470 = vmatpush2.bf16.msra.mxu0 0
        %471 = vmatprep.mubr.bf16.mxu0 0
        %472 = vmatmul.mubr.bf16.gmra.mxu0 %v416
        %v473 = vpop.f32.mrf.mxu0
        %v474 = vadd.f32 %v400, %v473
        %v475 = vpop.f32.mrf.mxu0
        %v476 = vpop.f32.mrf.mxu0
        %v477 = vadd.f32 %v400, %v476
        %v478 = vpop.f32.mrf.mxu0
        %479 = vmatprep.mubr.bf16.mxu0 0
        %480 = vmatmul.mubr.bf16.gmra.mxu0 %v419
        %v481 = vpop.f32.mrf.mxu0
        %v482 = vadd.f32 %v400, %v481
        %v483 = vpop.f32.mrf.mxu0
        %v484 = vpop.f32.mrf.mxu0
        %v485 = vadd.f32 %v400, %v484
        %v486 = vpop.f32.mrf.mxu0
        %487 = vmatprep.mubr.bf16.mxu0 0
        %488 = vmatmul.mubr.bf16.gmra.mxu0 %v422
        %v489 = vpop.f32.mrf.mxu0
        %v490 = vadd.f32 %v400, %v489
        %v491 = vpop.f32.mrf.mxu0
        %v492 = vpop.f32.mrf.mxu0
        %v493 = vadd.f32 %v400, %v492
        %v494 = vpop.f32.mrf.mxu0
        %495 = vmatprep.mubr.bf16.mxu0 0
        %496 = vmatmul.mubr.bf16.gmra.mxu0 %v425
        %v497 = vpop.f32.mrf.mxu0
        %v498 = vadd.f32 %v400, %v497
        %v499 = vpop.f32.mrf.mxu0
        %v500 = vpop.f32.mrf.mxu0
        %v501 = vadd.f32 %v400, %v500
        %v502 = vpop.f32.mrf.mxu0
        %503 = vmatprep.mubr.bf16.mxu0 0
        %504 = vmatmul.mubr.bf16.gmra.mxu0 %v428
        %v505 = vpop.f32.mrf.mxu0
        %v506 = vadd.f32 %v400, %v505
        %v507 = vpop.f32.mrf.mxu0
        %v508 = vpop.f32.mrf.mxu0
        %v509 = vadd.f32 %v400, %v508
        %v510 = vpop.f32.mrf.mxu0
        %511 = vmatprep.mubr.bf16.mxu0 0
        %512 = vmatmul.mubr.bf16.gmra.mxu0 %v431
        %v513 = vpop.f32.mrf.mxu0
        %v514 = vadd.f32 %v400, %v513
        %v515 = vpop.f32.mrf.mxu0
        %v516 = vpop.f32.mrf.mxu0
        %v517 = vadd.f32 %v400, %v516
        %v518 = vpop.f32.mrf.mxu0
        %519 = vmatprep.mubr.bf16.mxu0 0
        %520 = vmatmul.mubr.bf16.gmra.mxu0 %v434
        %v521 = vpop.f32.mrf.mxu0
        %v522 = vadd.f32 %v400, %v521
        %v523 = vpop.f32.mrf.mxu0
        %v524 = vpop.f32.mrf.mxu0
        %v525 = vadd.f32 %v400, %v524
        %v526 = vpop.f32.mrf.mxu0
        %527 = vmatprep.mubr.bf16.mxu0 0
        %528 = vmatmul.mubr.bf16.gmra.mxu0 %v437
        %v529 = vpop.f32.mrf.mxu0
        %v530 = vadd.f32 %v400, %v529
        %v531 = vpop.f32.mrf.mxu0
        %v532 = vpop.f32.mrf.mxu0
        %v533 = vadd.f32 %v400, %v532
        %v534 = vpop.f32.mrf.mxu0
        %535 = vdwg.mxu0
        %v536 = vmax.f32 %v474, 0.0
        %v537 = vmax.f32 %v477, 0.0
        %v538 = vmax.f32 %v482, 0.0
        %v539 = vmax.f32 %v485, 0.0
        %v540 = vmax.f32 %v490, 0.0
        %v541 = vmax.f32 %v493, 0.0
        %v542 = vmax.f32 %v498, 0.0
        %v543 = vmax.f32 %v501, 0.0
        %v544 = vmax.f32 %v506, 0.0
        %v545 = vmax.f32 %v509, 0.0
        %v546 = vmax.f32 %v514, 0.0
        %v547 = vmax.f32 %v517, 0.0
        %v548 = vmax.f32 %v522, 0.0
        %v549 = vmax.f32 %v525, 0.0
        %v550 = vmax.f32 %v530, 0.0
        %v551 = vmax.f32 %v533, 0.0
        %v552 = vpack.c.bf16 %v537, %v536
        %v553 = vpack.c.bf16 %v539, %v538
        %v554 = vpack.c.bf16 %v541, %v540
        %v555 = vpack.c.bf16 %v543, %v542
        %v556 = vpack.c.bf16 %v545, %v544
        %v557 = vpack.c.bf16 %v547, %v546
        %v558 = vpack.c.bf16 %v549, %v548
        %v559 = vpack.c.bf16 %v551, %v550
        %v560 = vld [vmem:[#allocation2] sm:$0xff]
        %v561 = vld [vmem:[#allocation2 + $0x8] sm:$0xff]
        %v562 = vld [vmem:[#allocation2 + $0x10] sm:$0xff]
        %v563 = vld [vmem:[#allocation2 + $0x18] sm:$0xff]
        %v564 = vld [vmem:[#allocation2 + $0x20] sm:$0xff]
        %v565 = vld [vmem:[#allocation2 + $0x28] sm:$0xff]
        %v566 = vld [vmem:[#allocation2 + $0x30] sm:$0xff]
        %v567 = vld [vmem:[#allocation2 + $0x38] sm:$0xff]
        %v568 = vld [vmem:[#allocation2 + $0x40] sm:$0xff]
        %v569 = vld [vmem:[#allocation2 + $0x48] sm:$0xff]
        %v570 = vld [vmem:[#allocation2 + $0x50] sm:$0xff]
        %v571 = vld [vmem:[#allocation2 + $0x58] sm:$0xff]
        %v572 = vld [vmem:[#allocation2 + $0x60] sm:$0xff]
        %v573 = vld [vmem:[#allocation2 + $0x68] sm:$0xff]
        %v574 = vld [vmem:[#allocation2 + $0x70] sm:$0xff]
        %v575 = vld [vmem:[#allocation2 + $0x78] sm:$0xff]
        %v576 = vld [vmem:[%s4] sm:$0x3]
        %v578 = vlaneseq
        %v579 = vshrl.u32 %v578, 7
        %v580 = vsub.s32 0, %v579
        %v581 = vrot.slane %v576, %v580
        %v582 = vlaneseq
        %v583 = vshrl.u32 %v582, 7
        %v584 = vsub.s32 1, %v583
        %v585 = vrot.slane %v576, %v584
        %v604 = vunpack.c.l.b16 %v560
        %v605 = vunpack.c.h.b16 %v560
        %v606 = vunpack.c.l.b16 %v561
        %v607 = vunpack.c.h.b16 %v561
        %v608 = vunpack.c.l.b16 %v562
        %v609 = vunpack.c.h.b16 %v562
        %v610 = vunpack.c.l.b16 %v563
        %v611 = vunpack.c.h.b16 %v563
        %v612 = vunpack.c.l.b16 %v564
        %v613 = vunpack.c.h.b16 %v564
        %v614 = vunpack.c.l.b16 %v565
        %v615 = vunpack.c.h.b16 %v565
        %v616 = vunpack.c.l.b16 %v566
        %v617 = vunpack.c.h.b16 %v566
        %v618 = vunpack.c.l.b16 %v567
        %v619 = vunpack.c.h.b16 %v567
        %v620 = vunpack.c.l.b16 %v568
        %v621 = vunpack.c.h.b16 %v568
        %v622 = vunpack.c.l.b16 %v569
        %v623 = vunpack.c.h.b16 %v569
        %v624 = vunpack.c.l.b16 %v570
        %v625 = vunpack.c.h.b16 %v570
        %v626 = vunpack.c.l.b16 %v571
        %v627 = vunpack.c.h.b16 %v571
        %v628 = vunpack.c.l.b16 %v572
        %v629 = vunpack.c.h.b16 %v572
        %v630 = vunpack.c.l.b16 %v573
        %v631 = vunpack.c.h.b16 %v573
        %v632 = vunpack.c.l.b16 %v574
        %v633 = vunpack.c.h.b16 %v574
        %v634 = vunpack.c.l.b16 %v575
        %v635 = vunpack.c.h.b16 %v575
        %v636 = vpack.c.b16 %v606, %v604
        %v637 = vpack.c.b16 %v607, %v605
        %v638 = vpack.c.b16 %v610, %v608
        %v639 = vpack.c.b16 %v611, %v609
        %v640 = vpack.c.b16 %v614, %v612
        %v641 = vpack.c.b16 %v615, %v613
        %v642 = vpack.c.b16 %v618, %v616
        %v643 = vpack.c.b16 %v619, %v617
        %v644 = vpack.c.b16 %v622, %v620
        %v645 = vpack.c.b16 %v623, %v621
        %v646 = vpack.c.b16 %v626, %v624
        %v647 = vpack.c.b16 %v627, %v625
        %v648 = vpack.c.b16 %v630, %v628
        %v649 = vpack.c.b16 %v631, %v629
        %v650 = vpack.c.b16 %v634, %v632
        %v651 = vpack.c.b16 %v635, %v633
        %668 = vmatprep.subr.bf16.mxu0 %v651
        %669 = vmatpush1.bf16.msra.mxu0 %v650
        %670 = vmatprep.subr.bf16.mxu0 %v649
        %671 = vmatpush1.bf16.msra.mxu0 %v648
        %672 = vmatprep.subr.bf16.mxu0 %v647
        %673 = vmatpush1.bf16.msra.mxu0 %v646
        %674 = vmatprep.subr.bf16.mxu0 %v645
        %675 = vmatpush1.bf16.msra.mxu0 %v644
        %676 = vmatprep.subr.bf16.mxu0 %v643
        %677 = vmatpush1.bf16.msra.mxu0 %v642
        %678 = vmatprep.subr.bf16.mxu0 %v641
        %679 = vmatpush1.bf16.msra.mxu0 %v640
        %680 = vmatprep.subr.bf16.mxu0 %v639
        %681 = vmatpush1.bf16.msra.mxu0 %v638
        %682 = vmatprep.subr.bf16.mxu0 %v637
        %683 = vmatpush1.bf16.msra.mxu0 %v636
        %684 = vmatprep.subr.bf16.mxu0 0
        %685 = vmatpush2.bf16.msra.mxu0 0
        %686 = vmatprep.subr.bf16.mxu0 0
        %687 = vmatpush2.bf16.msra.mxu0 0
        %688 = vmatprep.subr.bf16.mxu0 0
        %689 = vmatpush2.bf16.msra.mxu0 0
        %690 = vmatprep.subr.bf16.mxu0 0
        %691 = vmatpush2.bf16.msra.mxu0 0
        %692 = vmatprep.subr.bf16.mxu0 0
        %693 = vmatpush2.bf16.msra.mxu0 0
        %694 = vmatprep.subr.bf16.mxu0 0
        %695 = vmatpush2.bf16.msra.mxu0 0
        %696 = vmatprep.subr.bf16.mxu0 0
        %697 = vmatpush2.bf16.msra.mxu0 0
        %698 = vmatprep.subr.bf16.mxu0 0
        %699 = vmatpush2.bf16.msra.mxu0 0
        %700 = vmatprep.mubr.bf16.mxu0 0
        %701 = vmatmul.mubr.bf16.gmra.mxu0 %v552
        %v702 = vpop.f32.mrf.mxu0
        %v703 = vadd.f32 %v581, %v702
        %v704 = vpop.f32.mrf.mxu0
        %v705 = vadd.f32 %v585, %v704
        %v706 = vpop.f32.mrf.mxu0
        %v707 = vadd.f32 %v581, %v706
        %v708 = vpop.f32.mrf.mxu0
        %v709 = vadd.f32 %v585, %v708
        %710 = vmatprep.mubr.bf16.mxu0 0
        %711 = vmatmul.mubr.bf16.gmra.mxu0 %v553
        %v712 = vpop.f32.mrf.mxu0
        %v713 = vadd.f32 %v581, %v712
        %v714 = vpop.f32.mrf.mxu0
        %v715 = vadd.f32 %v585, %v714
        %v716 = vpop.f32.mrf.mxu0
        %v717 = vadd.f32 %v581, %v716
        %v718 = vpop.f32.mrf.mxu0
        %v719 = vadd.f32 %v585, %v718
        %720 = vmatprep.mubr.bf16.mxu0 0
        %721 = vmatmul.mubr.bf16.gmra.mxu0 %v554
        %v722 = vpop.f32.mrf.mxu0
        %v723 = vadd.f32 %v581, %v722
        %v724 = vpop.f32.mrf.mxu0
        %v725 = vadd.f32 %v585, %v724
        %v726 = vpop.f32.mrf.mxu0
        %v727 = vadd.f32 %v581, %v726
        %v728 = vpop.f32.mrf.mxu0
        %v729 = vadd.f32 %v585, %v728
        %730 = vmatprep.mubr.bf16.mxu0 0
        %731 = vmatmul.mubr.bf16.gmra.mxu0 %v555
        %v732 = vpop.f32.mrf.mxu0
        %v733 = vadd.f32 %v581, %v732
        %v734 = vpop.f32.mrf.mxu0
        %v735 = vadd.f32 %v585, %v734
        %v736 = vpop.f32.mrf.mxu0
        %v737 = vadd.f32 %v581, %v736
        %v738 = vpop.f32.mrf.mxu0
        %v739 = vadd.f32 %v585, %v738
        %740 = vmatprep.mubr.bf16.mxu0 0
        %741 = vmatmul.mubr.bf16.gmra.mxu0 %v556
        %v742 = vpop.f32.mrf.mxu0
        %v743 = vadd.f32 %v581, %v742
        %v744 = vpop.f32.mrf.mxu0
        %v745 = vadd.f32 %v585, %v744
        %v746 = vpop.f32.mrf.mxu0
        %v747 = vadd.f32 %v581, %v746
        %v748 = vpop.f32.mrf.mxu0
        %v749 = vadd.f32 %v585, %v748
        %750 = vmatprep.mubr.bf16.mxu0 0
        %751 = vmatmul.mubr.bf16.gmra.mxu0 %v557
        %v752 = vpop.f32.mrf.mxu0
        %v753 = vadd.f32 %v581, %v752
        %v754 = vpop.f32.mrf.mxu0
        %v755 = vadd.f32 %v585, %v754
        %v756 = vpop.f32.mrf.mxu0
        %v757 = vadd.f32 %v581, %v756
        %v758 = vpop.f32.mrf.mxu0
        %v759 = vadd.f32 %v585, %v758
        %760 = vmatprep.mubr.bf16.mxu0 0
        %761 = vmatmul.mubr.bf16.gmra.mxu0 %v558
        %v762 = vpop.f32.mrf.mxu0
        %v763 = vadd.f32 %v581, %v762
        %v764 = vpop.f32.mrf.mxu0
        %v765 = vadd.f32 %v585, %v764
        %v766 = vpop.f32.mrf.mxu0
        %v767 = vadd.f32 %v581, %v766
        %v768 = vpop.f32.mrf.mxu0
        %v769 = vadd.f32 %v585, %v768
        %770 = vmatprep.mubr.bf16.mxu0 0
        %771 = vmatmul.mubr.bf16.gmra.mxu0 %v559
        %v772 = vpop.f32.mrf.mxu0
        %v773 = vadd.f32 %v581, %v772
        %v774 = vpop.f32.mrf.mxu0
        %v775 = vadd.f32 %v585, %v774
        %v776 = vpop.f32.mrf.mxu0
        %v777 = vadd.f32 %v581, %v776
        %v778 = vpop.f32.mrf.mxu0
        %v779 = vadd.f32 %v585, %v778
        %780 = vdwg.mxu0
        %v781 = vmax.f32 %v703, 0.0
        %v782 = vmax.f32 %v705, 0.0
        %v783 = vmax.f32 %v707, 0.0
        %v784 = vmax.f32 %v709, 0.0
        %v785 = vmax.f32 %v713, 0.0
        %v786 = vmax.f32 %v715, 0.0
        %v787 = vmax.f32 %v717, 0.0
        %v788 = vmax.f32 %v719, 0.0
        %v789 = vmax.f32 %v723, 0.0
        %v790 = vmax.f32 %v725, 0.0
        %v791 = vmax.f32 %v727, 0.0
        %v792 = vmax.f32 %v729, 0.0
        %v793 = vmax.f32 %v733, 0.0
        %v794 = vmax.f32 %v735, 0.0
        %v795 = vmax.f32 %v737, 0.0
        %v796 = vmax.f32 %v739, 0.0
        %v797 = vmax.f32 %v743, 0.0
        %v798 = vmax.f32 %v745, 0.0
        %v799 = vmax.f32 %v747, 0.0
        %v800 = vmax.f32 %v749, 0.0
        %v801 = vmax.f32 %v753, 0.0
        %v802 = vmax.f32 %v755, 0.0
        %v803 = vmax.f32 %v757, 0.0
        %v804 = vmax.f32 %v759, 0.0
        %v805 = vmax.f32 %v763, 0.0
        %v806 = vmax.f32 %v765, 0.0
        %v807 = vmax.f32 %v767, 0.0
        %v808 = vmax.f32 %v769, 0.0
        %v809 = vmax.f32 %v773, 0.0
        %v810 = vmax.f32 %v775, 0.0
        %v811 = vmax.f32 %v777, 0.0
        %v812 = vmax.f32 %v779, 0.0
        %v813 = vpack.c.bf16 %v783, %v781
        %v814 = vpack.c.bf16 %v784, %v782
        %v815 = vpack.c.bf16 %v787, %v785
        %v816 = vpack.c.bf16 %v788, %v786
        %v817 = vpack.c.bf16 %v791, %v789
        %v818 = vpack.c.bf16 %v792, %v790
        %v819 = vpack.c.bf16 %v795, %v793
        %v820 = vpack.c.bf16 %v796, %v794
        %v821 = vpack.c.bf16 %v799, %v797
        %v822 = vpack.c.bf16 %v800, %v798
        %v823 = vpack.c.bf16 %v803, %v801
        %v824 = vpack.c.bf16 %v804, %v802
        %v825 = vpack.c.bf16 %v807, %v805
        %v826 = vpack.c.bf16 %v808, %v806
        %v827 = vpack.c.bf16 %v811, %v809
        %v828 = vpack.c.bf16 %v812, %v810
        %v829 = vld [vmem:[#allocation4] sm:$0xff]
        %v830 = vld [vmem:[#allocation4 + $0x8] sm:$0xff]
        %v831 = vld [vmem:[#allocation4 + $0x10] sm:$0xff]
        %v832 = vld [vmem:[#allocation4 + $0x18] sm:$0xff]
        %v833 = vld [vmem:[#allocation4 + $0x20] sm:$0xff]
        %v834 = vld [vmem:[#allocation4 + $0x28] sm:$0xff]
        %v835 = vld [vmem:[#allocation4 + $0x30] sm:$0xff]
        %v836 = vld [vmem:[#allocation4 + $0x38] sm:$0xff]
        %v837 = vld [vmem:[#allocation4 + $0x40] sm:$0xff]
        %v838 = vld [vmem:[#allocation4 + $0x48] sm:$0xff]
        %v839 = vld [vmem:[#allocation4 + $0x50] sm:$0xff]
        %v840 = vld [vmem:[#allocation4 + $0x58] sm:$0xff]
        %v841 = vld [vmem:[#allocation4 + $0x60] sm:$0xff]
        %v842 = vld [vmem:[#allocation4 + $0x68] sm:$0xff]
        %v843 = vld [vmem:[#allocation4 + $0x70] sm:$0xff]
        %v844 = vld [vmem:[#allocation4 + $0x78] sm:$0xff]
        %v845 = vld [vmem:[#allocation4 + $0x80] sm:$0xff]
        %v846 = vld [vmem:[#allocation4 + $0x88] sm:$0xff]
        %v847 = vld [vmem:[#allocation4 + $0x90] sm:$0xff]
        %v848 = vld [vmem:[#allocation4 + $0x98] sm:$0xff]
        %v849 = vld [vmem:[#allocation4 + $0xa0] sm:$0xff]
        %v850 = vld [vmem:[#allocation4 + $0xa8] sm:$0xff]
        %v851 = vld [vmem:[#allocation4 + $0xb0] sm:$0xff]
        %v852 = vld [vmem:[#allocation4 + $0xb8] sm:$0xff]
        %v853 = vld [vmem:[#allocation4 + $0xc0] sm:$0xff]
        %v854 = vld [vmem:[#allocation4 + $0xc8] sm:$0xff]
        %v855 = vld [vmem:[#allocation4 + $0xd0] sm:$0xff]
        %v856 = vld [vmem:[#allocation4 + $0xd8] sm:$0xff]
        %v857 = vld [vmem:[#allocation4 + $0xe0] sm:$0xff]
        %v858 = vld [vmem:[#allocation4 + $0xe8] sm:$0xff]
        %v859 = vld [vmem:[#allocation4 + $0xf0] sm:$0xff]
        %v860 = vld [vmem:[#allocation4 + $0xf8] sm:$0xff]
        %v861 = vld [vmem:[#allocation4 + $0x100] sm:$0xff]
        %v862 = vld [vmem:[#allocation4 + $0x108] sm:$0xff]
        %v863 = vld [vmem:[#allocation4 + $0x110] sm:$0xff]
        %v864 = vld [vmem:[#allocation4 + $0x118] sm:$0xff]
        %v865 = vld [vmem:[#allocation4 + $0x120] sm:$0xff]
        %v866 = vld [vmem:[#allocation4 + $0x128] sm:$0xff]
        %v867 = vld [vmem:[#allocation4 + $0x130] sm:$0xff]
        %v868 = vld [vmem:[#allocation4 + $0x138] sm:$0xff]
        %v869 = vld [vmem:[#allocation4 + $0x140] sm:$0xff]
        %v870 = vld [vmem:[#allocation4 + $0x148] sm:$0xff]
        %v871 = vld [vmem:[#allocation4 + $0x150] sm:$0xff]
        %v872 = vld [vmem:[#allocation4 + $0x158] sm:$0xff]
        %v873 = vld [vmem:[#allocation4 + $0x160] sm:$0xff]
        %v874 = vld [vmem:[#allocation4 + $0x168] sm:$0xff]
        %v875 = vld [vmem:[#allocation4 + $0x170] sm:$0xff]
        %v876 = vld [vmem:[#allocation4 + $0x178] sm:$0xff]
        %v877 = vld [vmem:[#allocation4 + $0x180] sm:$0xff]
        %v878 = vld [vmem:[#allocation4 + $0x188] sm:$0xff]
        %v879 = vld [vmem:[#allocation4 + $0x190] sm:$0xff]
        %v880 = vld [vmem:[#allocation4 + $0x198] sm:$0xff]
        %v881 = vld [vmem:[#allocation4 + $0x1a0] sm:$0xff]
        %v882 = vld [vmem:[#allocation4 + $0x1a8] sm:$0xff]
        %v883 = vld [vmem:[#allocation4 + $0x1b0] sm:$0xff]
        %v884 = vld [vmem:[#allocation4 + $0x1b8] sm:$0xff]
        %v885 = vld [vmem:[#allocation4 + $0x1c0] sm:$0xff]
        %v886 = vld [vmem:[#allocation4 + $0x1c8] sm:$0xff]
        %v887 = vld [vmem:[#allocation4 + $0x1d0] sm:$0xff]
        %v888 = vld [vmem:[#allocation4 + $0x1d8] sm:$0xff]
        %v889 = vld [vmem:[#allocation4 + $0x1e0] sm:$0xff]
        %v890 = vld [vmem:[#allocation4 + $0x1e8] sm:$0xff]
        %v891 = vld [vmem:[#allocation4 + $0x1f0] sm:$0xff]
        %v892 = vld [vmem:[#allocation4 + $0x1f8] sm:$0xff]
        %v893 = vld [vmem:[%s6] sm:$0xf]
        %v895 = vlaneseq
        %v896 = vshrl.u32 %v895, 7
        %v897 = vsub.s32 0, %v896
        %v898 = vrot.slane %v893, %v897
        %v899 = vlaneseq
        %v900 = vshrl.u32 %v899, 7
        %v901 = vsub.s32 1, %v900
        %v902 = vrot.slane %v893, %v901
        %v903 = vlaneseq
        %v904 = vshrl.u32 %v903, 7
        %v905 = vsub.s32 2, %v904
        %v906 = vrot.slane %v893, %v905
        %v907 = vlaneseq
        %v908 = vshrl.u32 %v907, 7
        %v909 = vsub.s32 3, %v908
        %v910 = vrot.slane %v893, %v909
        %v979 = vunpack.c.l.b16 %v829
        %v980 = vunpack.c.h.b16 %v829
        %v981 = vunpack.c.l.b16 %v830
        %v982 = vunpack.c.h.b16 %v830
        %v983 = vunpack.c.l.b16 %v831
        %v984 = vunpack.c.h.b16 %v831
        %v985 = vunpack.c.l.b16 %v832
        %v986 = vunpack.c.h.b16 %v832
        %v987 = vunpack.c.l.b16 %v833
        %v988 = vunpack.c.h.b16 %v833
        %v989 = vunpack.c.l.b16 %v834
        %v990 = vunpack.c.h.b16 %v834
        %v991 = vunpack.c.l.b16 %v835
        %v992 = vunpack.c.h.b16 %v835
        %v993 = vunpack.c.l.b16 %v836
        %v994 = vunpack.c.h.b16 %v836
        %v995 = vunpack.c.l.b16 %v837
        %v996 = vunpack.c.h.b16 %v837
        %v997 = vunpack.c.l.b16 %v838
        %v998 = vunpack.c.h.b16 %v838
        %v999 = vunpack.c.l.b16 %v839
        %v1000 = vunpack.c.h.b16 %v839
        %v1001 = vunpack.c.l.b16 %v840
        %v1002 = vunpack.c.h.b16 %v840
        %v1003 = vunpack.c.l.b16 %v841
        %v1004 = vunpack.c.h.b16 %v841
        %v1005 = vunpack.c.l.b16 %v842
        %v1006 = vunpack.c.h.b16 %v842
        %v1007 = vunpack.c.l.b16 %v843
        %v1008 = vunpack.c.h.b16 %v843
        %v1009 = vunpack.c.l.b16 %v844
        %v1010 = vunpack.c.h.b16 %v844
        %v1011 = vunpack.c.l.b16 %v845
        %v1012 = vunpack.c.h.b16 %v845
        %v1013 = vunpack.c.l.b16 %v846
        %v1014 = vunpack.c.h.b16 %v846
        %v1015 = vunpack.c.l.b16 %v847
        %v1016 = vunpack.c.h.b16 %v847
        %v1017 = vunpack.c.l.b16 %v848
        %v1018 = vunpack.c.h.b16 %v848
        %v1019 = vunpack.c.l.b16 %v849
        %v1020 = vunpack.c.h.b16 %v849
        %v1021 = vunpack.c.l.b16 %v850
        %v1022 = vunpack.c.h.b16 %v850
        %v1023 = vunpack.c.l.b16 %v851
        %v1024 = vunpack.c.h.b16 %v851
        %v1025 = vunpack.c.l.b16 %v852
        %v1026 = vunpack.c.h.b16 %v852
        %v1027 = vunpack.c.l.b16 %v853
        %v1028 = vunpack.c.h.b16 %v853
        %v1029 = vunpack.c.l.b16 %v854
        %v1030 = vunpack.c.h.b16 %v854
        %v1031 = vunpack.c.l.b16 %v855
        %v1032 = vunpack.c.h.b16 %v855
        %v1033 = vunpack.c.l.b16 %v856
        %v1034 = vunpack.c.h.b16 %v856
        %v1035 = vunpack.c.l.b16 %v857
        %v1036 = vunpack.c.h.b16 %v857
        %v1037 = vunpack.c.l.b16 %v858
        %v1038 = vunpack.c.h.b16 %v858
        %v1039 = vunpack.c.l.b16 %v859
        %v1040 = vunpack.c.h.b16 %v859
        %v1041 = vunpack.c.l.b16 %v860
        %v1042 = vunpack.c.h.b16 %v860
        %v1043 = vunpack.c.l.b16 %v861
        %v1044 = vunpack.c.h.b16 %v861
        %v1045 = vunpack.c.l.b16 %v862
        %v1046 = vunpack.c.h.b16 %v862
        %v1047 = vunpack.c.l.b16 %v863
        %v1048 = vunpack.c.h.b16 %v863
        %v1049 = vunpack.c.l.b16 %v864
        %v1050 = vunpack.c.h.b16 %v864
        %v1051 = vunpack.c.l.b16 %v865
        %v1052 = vunpack.c.h.b16 %v865
        %v1053 = vunpack.c.l.b16 %v866
        %v1054 = vunpack.c.h.b16 %v866
        %v1055 = vunpack.c.l.b16 %v867
        %v1056 = vunpack.c.h.b16 %v867
        %v1057 = vunpack.c.l.b16 %v868
        %v1058 = vunpack.c.h.b16 %v868
        %v1059 = vunpack.c.l.b16 %v869
        %v1060 = vunpack.c.h.b16 %v869
        %v1061 = vunpack.c.l.b16 %v870
        %v1062 = vunpack.c.h.b16 %v870
        %v1063 = vunpack.c.l.b16 %v871
        %v1064 = vunpack.c.h.b16 %v871
        %v1065 = vunpack.c.l.b16 %v872
        %v1066 = vunpack.c.h.b16 %v872
        %v1067 = vunpack.c.l.b16 %v873
        %v1068 = vunpack.c.h.b16 %v873
        %v1069 = vunpack.c.l.b16 %v874
        %v1070 = vunpack.c.h.b16 %v874
        %v1071 = vunpack.c.l.b16 %v875
        %v1072 = vunpack.c.h.b16 %v875
        %v1073 = vunpack.c.l.b16 %v876
        %v1074 = vunpack.c.h.b16 %v876
        %v1075 = vunpack.c.l.b16 %v877
        %v1076 = vunpack.c.h.b16 %v877
        %v1077 = vunpack.c.l.b16 %v878
        %v1078 = vunpack.c.h.b16 %v878
        %v1079 = vunpack.c.l.b16 %v879
        %v1080 = vunpack.c.h.b16 %v879
        %v1081 = vunpack.c.l.b16 %v880
        %v1082 = vunpack.c.h.b16 %v880
        %v1083 = vunpack.c.l.b16 %v881
        %v1084 = vunpack.c.h.b16 %v881
        %v1085 = vunpack.c.l.b16 %v882
        %v1086 = vunpack.c.h.b16 %v882
        %v1087 = vunpack.c.l.b16 %v883
        %v1088 = vunpack.c.h.b16 %v883
        %v1089 = vunpack.c.l.b16 %v884
        %v1090 = vunpack.c.h.b16 %v884
        %v1091 = vunpack.c.l.b16 %v885
        %v1092 = vunpack.c.h.b16 %v885
        %v1093 = vunpack.c.l.b16 %v886
        %v1094 = vunpack.c.h.b16 %v886
        %v1095 = vunpack.c.l.b16 %v887
        %v1096 = vunpack.c.h.b16 %v887
        %v1097 = vunpack.c.l.b16 %v888
        %v1098 = vunpack.c.h.b16 %v888
        %v1099 = vunpack.c.l.b16 %v889
        %v1100 = vunpack.c.h.b16 %v889
        %v1101 = vunpack.c.l.b16 %v890
        %v1102 = vunpack.c.h.b16 %v890
        %v1103 = vunpack.c.l.b16 %v891
        %v1104 = vunpack.c.h.b16 %v891
        %v1105 = vunpack.c.l.b16 %v892
        %v1106 = vunpack.c.h.b16 %v892
        %v1107 = vpack.c.b16 %v983, %v979
        %v1108 = vpack.c.b16 %v984, %v980
        %v1109 = vpack.c.b16 %v985, %v981
        %v1110 = vpack.c.b16 %v986, %v982
        %v1111 = vpack.c.b16 %v991, %v987
        %v1112 = vpack.c.b16 %v992, %v988
        %v1113 = vpack.c.b16 %v993, %v989
        %v1114 = vpack.c.b16 %v994, %v990
        %v1115 = vpack.c.b16 %v999, %v995
        %v1116 = vpack.c.b16 %v1000, %v996
        %v1117 = vpack.c.b16 %v1001, %v997
        %v1118 = vpack.c.b16 %v1002, %v998
        %v1119 = vpack.c.b16 %v1007, %v1003
        %v1120 = vpack.c.b16 %v1008, %v1004
        %v1121 = vpack.c.b16 %v1009, %v1005
        %v1122 = vpack.c.b16 %v1010, %v1006
        %v1123 = vpack.c.b16 %v1015, %v1011
        %v1124 = vpack.c.b16 %v1016, %v1012
        %v1125 = vpack.c.b16 %v1017, %v1013
        %v1126 = vpack.c.b16 %v1018, %v1014
        %v1127 = vpack.c.b16 %v1023, %v1019
        %v1128 = vpack.c.b16 %v1024, %v1020
        %v1129 = vpack.c.b16 %v1025, %v1021
        %v1130 = vpack.c.b16 %v1026, %v1022
        %v1131 = vpack.c.b16 %v1031, %v1027
        %v1132 = vpack.c.b16 %v1032, %v1028
        %v1133 = vpack.c.b16 %v1033, %v1029
        %v1134 = vpack.c.b16 %v1034, %v1030
        %v1135 = vpack.c.b16 %v1039, %v1035
        %v1136 = vpack.c.b16 %v1040, %v1036
        %v1137 = vpack.c.b16 %v1041, %v1037
        %v1138 = vpack.c.b16 %v1042, %v1038
        %v1139 = vpack.c.b16 %v1047, %v1043
        %v1140 = vpack.c.b16 %v1048, %v1044
        %v1141 = vpack.c.b16 %v1049, %v1045
        %v1142 = vpack.c.b16 %v1050, %v1046
        %v1143 = vpack.c.b16 %v1055, %v1051
        %v1144 = vpack.c.b16 %v1056, %v1052
        %v1145 = vpack.c.b16 %v1057, %v1053
        %v1146 = vpack.c.b16 %v1058, %v1054
        %v1147 = vpack.c.b16 %v1063, %v1059
        %v1148 = vpack.c.b16 %v1064, %v1060
        %v1149 = vpack.c.b16 %v1065, %v1061
        %v1150 = vpack.c.b16 %v1066, %v1062
        %v1151 = vpack.c.b16 %v1071, %v1067
        %v1152 = vpack.c.b16 %v1072, %v1068
        %v1153 = vpack.c.b16 %v1073, %v1069
        %v1154 = vpack.c.b16 %v1074, %v1070
        %v1155 = vpack.c.b16 %v1079, %v1075
        %v1156 = vpack.c.b16 %v1080, %v1076
        %v1157 = vpack.c.b16 %v1081, %v1077
        %v1158 = vpack.c.b16 %v1082, %v1078
        %v1159 = vpack.c.b16 %v1087, %v1083
        %v1160 = vpack.c.b16 %v1088, %v1084
        %v1161 = vpack.c.b16 %v1089, %v1085
        %v1162 = vpack.c.b16 %v1090, %v1086
        %v1163 = vpack.c.b16 %v1095, %v1091
        %v1164 = vpack.c.b16 %v1096, %v1092
        %v1165 = vpack.c.b16 %v1097, %v1093
        %v1166 = vpack.c.b16 %v1098, %v1094
        %v1167 = vpack.c.b16 %v1103, %v1099
        %v1168 = vpack.c.b16 %v1104, %v1100
        %v1169 = vpack.c.b16 %v1105, %v1101
        %v1170 = vpack.c.b16 %v1106, %v1102
        %1235 = vmatprep.subr.bf16.mxu0 %v1136
        %1236 = vmatpush1.bf16.msra.mxu0 %v1135
        %1237 = vmatprep.subr.bf16.mxu0 %v1132
        %1238 = vmatpush1.bf16.msra.mxu0 %v1131
        %1239 = vmatprep.subr.bf16.mxu0 %v1128
        %1240 = vmatpush1.bf16.msra.mxu0 %v1127
        %1241 = vmatprep.subr.bf16.mxu0 %v1124
        %1242 = vmatpush1.bf16.msra.mxu0 %v1123
        %1243 = vmatprep.subr.bf16.mxu0 %v1120
        %1244 = vmatpush1.bf16.msra.mxu0 %v1119
        %1245 = vmatprep.subr.bf16.mxu0 %v1116
        %1246 = vmatpush1.bf16.msra.mxu0 %v1115
        %1247 = vmatprep.subr.bf16.mxu0 %v1112
        %1248 = vmatpush1.bf16.msra.mxu0 %v1111
        %1249 = vmatprep.subr.bf16.mxu0 %v1108
        %1250 = vmatpush1.bf16.msra.mxu0 %v1107
        %1251 = vmatprep.subr.bf16.mxu0 %v1168
        %1252 = vmatpush2.bf16.msra.mxu0 %v1167
        %1253 = vmatprep.subr.bf16.mxu0 %v1164
        %1254 = vmatpush2.bf16.msra.mxu0 %v1163
        %1255 = vmatprep.subr.bf16.mxu0 %v1160
        %1256 = vmatpush2.bf16.msra.mxu0 %v1159
        %1257 = vmatprep.subr.bf16.mxu0 %v1156
        %1258 = vmatpush2.bf16.msra.mxu0 %v1155
        %1259 = vmatprep.subr.bf16.mxu0 %v1152
        %1260 = vmatpush2.bf16.msra.mxu0 %v1151
        %1261 = vmatprep.subr.bf16.mxu0 %v1148
        %1262 = vmatpush2.bf16.msra.mxu0 %v1147
        %1263 = vmatprep.subr.bf16.mxu0 %v1144
        %1264 = vmatpush2.bf16.msra.mxu0 %v1143
        %1265 = vmatprep.subr.bf16.mxu0 %v1140
        %1266 = vmatpush2.bf16.msra.mxu0 %v1139
        %1267 = vmatprep.mubr.bf16.mxu0 %v814
        %1268 = vmatmul.mubr.bf16.gmra.mxu0 %v813
        %v1269 = vpop.f32.mrf.mxu0
        %v1270 = vadd.f32 %v898, %v1269
        %v1271 = vpop.f32.mrf.mxu0
        %v1272 = vadd.f32 %v902, %v1271
        %v1273 = vpop.f32.mrf.mxu0
        %v1274 = vadd.f32 %v898, %v1273
        %v1275 = vpop.f32.mrf.mxu0
        %v1276 = vadd.f32 %v902, %v1275
        %1277 = vmatprep.mubr.bf16.mxu0 %v816
        %1278 = vmatmul.mubr.bf16.gmra.mxu0 %v815
        %v1279 = vpop.f32.mrf.mxu0
        %v1280 = vadd.f32 %v898, %v1279
        %v1281 = vpop.f32.mrf.mxu0
        %v1282 = vadd.f32 %v902, %v1281
        %v1283 = vpop.f32.mrf.mxu0
        %v1284 = vadd.f32 %v898, %v1283
        %v1285 = vpop.f32.mrf.mxu0
        %v1286 = vadd.f32 %v902, %v1285
        %1287 = vmatprep.mubr.bf16.mxu0 %v818
        %1288 = vmatmul.mubr.bf16.gmra.mxu0 %v817
        %v1289 = vpop.f32.mrf.mxu0
        %v1290 = vadd.f32 %v898, %v1289
        %v1291 = vpop.f32.mrf.mxu0
        %v1292 = vadd.f32 %v902, %v1291
        %v1293 = vpop.f32.mrf.mxu0
        %v1294 = vadd.f32 %v898, %v1293
        %v1295 = vpop.f32.mrf.mxu0
        %v1296 = vadd.f32 %v902, %v1295
        %1297 = vmatprep.mubr.bf16.mxu0 %v820
        %1298 = vmatmul.mubr.bf16.gmra.mxu0 %v819
        %v1299 = vpop.f32.mrf.mxu0
        %v1300 = vadd.f32 %v898, %v1299
        %v1301 = vpop.f32.mrf.mxu0
        %v1302 = vadd.f32 %v902, %v1301
        %v1303 = vpop.f32.mrf.mxu0
        %v1304 = vadd.f32 %v898, %v1303
        %v1305 = vpop.f32.mrf.mxu0
        %v1306 = vadd.f32 %v902, %v1305
        %1307 = vmatprep.mubr.bf16.mxu0 %v822
        %1308 = vmatmul.mubr.bf16.gmra.mxu0 %v821
        %v1309 = vpop.f32.mrf.mxu0
        %v1310 = vadd.f32 %v898, %v1309
        %v1311 = vpop.f32.mrf.mxu0
        %v1312 = vadd.f32 %v902, %v1311
        %v1313 = vpop.f32.mrf.mxu0
        %v1314 = vadd.f32 %v898, %v1313
        %v1315 = vpop.f32.mrf.mxu0
        %v1316 = vadd.f32 %v902, %v1315
        %1317 = vmatprep.mubr.bf16.mxu0 %v824
        %1318 = vmatmul.mubr.bf16.gmra.mxu0 %v823
        %v1319 = vpop.f32.mrf.mxu0
        %v1320 = vadd.f32 %v898, %v1319
        %v1321 = vpop.f32.mrf.mxu0
        %v1322 = vadd.f32 %v902, %v1321
        %v1323 = vpop.f32.mrf.mxu0
        %v1324 = vadd.f32 %v898, %v1323
        %v1325 = vpop.f32.mrf.mxu0
        %v1326 = vadd.f32 %v902, %v1325
        %1327 = vmatprep.mubr.bf16.mxu0 %v826
        %1328 = vmatmul.mubr.bf16.gmra.mxu0 %v825
        %v1329 = vpop.f32.mrf.mxu0
        %v1330 = vadd.f32 %v898, %v1329
        %v1331 = vpop.f32.mrf.mxu0
        %v1332 = vadd.f32 %v902, %v1331
        %v1333 = vpop.f32.mrf.mxu0
        %v1334 = vadd.f32 %v898, %v1333
        %v1335 = vpop.f32.mrf.mxu0
        %v1336 = vadd.f32 %v902, %v1335
        %1337 = vmatprep.mubr.bf16.mxu0 %v828
        %1338 = vmatmul.mubr.bf16.gmra.mxu0 %v827
        %v1339 = vpop.f32.mrf.mxu0
        %v1340 = vadd.f32 %v898, %v1339
        %v1341 = vpop.f32.mrf.mxu0
        %v1342 = vadd.f32 %v902, %v1341
        %v1343 = vpop.f32.mrf.mxu0
        %v1344 = vadd.f32 %v898, %v1343
        %v1345 = vpop.f32.mrf.mxu0
        %v1346 = vadd.f32 %v902, %v1345
        %1347 = vdwg.mxu0
        %1348 = vmatprep.subr.bf16.mxu0 %v1138
        %1349 = vmatpush1.bf16.msra.mxu0 %v1137
        %1350 = vmatprep.subr.bf16.mxu0 %v1134
        %1351 = vmatpush1.bf16.msra.mxu0 %v1133
        %1352 = vmatprep.subr.bf16.mxu0 %v1130
        %1353 = vmatpush1.bf16.msra.mxu0 %v1129
        %1354 = vmatprep.subr.bf16.mxu0 %v1126
        %1355 = vmatpush1.bf16.msra.mxu0 %v1125
        %1356 = vmatprep.subr.bf16.mxu0 %v1122
        %1357 = vmatpush1.bf16.msra.mxu0 %v1121
        %1358 = vmatprep.subr.bf16.mxu0 %v1118
        %1359 = vmatpush1.bf16.msra.mxu0 %v1117
        %1360 = vmatprep.subr.bf16.mxu0 %v1114
        %1361 = vmatpush1.bf16.msra.mxu0 %v1113
        %1362 = vmatprep.subr.bf16.mxu0 %v1110
        %1363 = vmatpush1.bf16.msra.mxu0 %v1109
        %1364 = vmatprep.subr.bf16.mxu0 %v1170
        %1365 = vmatpush2.bf16.msra.mxu0 %v1169
        %1366 = vmatprep.subr.bf16.mxu0 %v1166
        %1367 = vmatpush2.bf16.msra.mxu0 %v1165
        %1368 = vmatprep.subr.bf16.mxu0 %v1162
        %1369 = vmatpush2.bf16.msra.mxu0 %v1161
        %1370 = vmatprep.subr.bf16.mxu0 %v1158
        %1371 = vmatpush2.bf16.msra.mxu0 %v1157
        %1372 = vmatprep.subr.bf16.mxu0 %v1154
        %1373 = vmatpush2.bf16.msra.mxu0 %v1153
        %1374 = vmatprep.subr.bf16.mxu0 %v1150
        %1375 = vmatpush2.bf16.msra.mxu0 %v1149
        %1376 = vmatprep.subr.bf16.mxu0 %v1146
        %1377 = vmatpush2.bf16.msra.mxu0 %v1145
        %1378 = vmatprep.subr.bf16.mxu0 %v1142
        %1379 = vmatpush2.bf16.msra.mxu0 %v1141
        %1380 = vmatprep.mubr.bf16.mxu0 %v814
        %1381 = vmatmul.mubr.bf16.gmra.mxu0 %v813
        %v1382 = vpop.f32.mrf.mxu0
        %v1383 = vadd.f32 %v906, %v1382
        %v1384 = vpop.f32.mrf.mxu0
        %v1385 = vadd.f32 %v910, %v1384
        %v1386 = vpop.f32.mrf.mxu0
        %v1387 = vadd.f32 %v906, %v1386
        %v1388 = vpop.f32.mrf.mxu0
        %v1389 = vadd.f32 %v910, %v1388
        %1390 = vmatprep.mubr.bf16.mxu0 %v816
        %1391 = vmatmul.mubr.bf16.gmra.mxu0 %v815
        %v1392 = vpop.f32.mrf.mxu0
        %v1393 = vadd.f32 %v906, %v1392
        %v1394 = vpop.f32.mrf.mxu0
        %v1395 = vadd.f32 %v910, %v1394
        %v1396 = vpop.f32.mrf.mxu0
        %v1397 = vadd.f32 %v906, %v1396
        %v1398 = vpop.f32.mrf.mxu0
        %v1399 = vadd.f32 %v910, %v1398
        %1400 = vmatprep.mubr.bf16.mxu0 %v818
        %1401 = vmatmul.mubr.bf16.gmra.mxu0 %v817
        %v1402 = vpop.f32.mrf.mxu0
        %v1403 = vadd.f32 %v906, %v1402
        %v1404 = vpop.f32.mrf.mxu0
        %v1405 = vadd.f32 %v910, %v1404
        %v1406 = vpop.f32.mrf.mxu0
        %v1407 = vadd.f32 %v906, %v1406
        %v1408 = vpop.f32.mrf.mxu0
        %v1409 = vadd.f32 %v910, %v1408
        %1410 = vmatprep.mubr.bf16.mxu0 %v820
        %1411 = vmatmul.mubr.bf16.gmra.mxu0 %v819
        %v1412 = vpop.f32.mrf.mxu0
        %v1413 = vadd.f32 %v906, %v1412
        %v1414 = vpop.f32.mrf.mxu0
        %v1415 = vadd.f32 %v910, %v1414
        %v1416 = vpop.f32.mrf.mxu0
        %v1417 = vadd.f32 %v906, %v1416
        %v1418 = vpop.f32.mrf.mxu0
        %v1419 = vadd.f32 %v910, %v1418
        %1420 = vmatprep.mubr.bf16.mxu0 %v822
        %1421 = vmatmul.mubr.bf16.gmra.mxu0 %v821
        %v1422 = vpop.f32.mrf.mxu0
        %v1423 = vadd.f32 %v906, %v1422
        %v1424 = vpop.f32.mrf.mxu0
        %v1425 = vadd.f32 %v910, %v1424
        %v1426 = vpop.f32.mrf.mxu0
        %v1427 = vadd.f32 %v906, %v1426
        %v1428 = vpop.f32.mrf.mxu0
        %v1429 = vadd.f32 %v910, %v1428
        %1430 = vmatprep.mubr.bf16.mxu0 %v824
        %1431 = vmatmul.mubr.bf16.gmra.mxu0 %v823
        %v1432 = vpop.f32.mrf.mxu0
        %v1433 = vadd.f32 %v906, %v1432
        %v1434 = vpop.f32.mrf.mxu0
        %v1435 = vadd.f32 %v910, %v1434
        %v1436 = vpop.f32.mrf.mxu0
        %v1437 = vadd.f32 %v906, %v1436
        %v1438 = vpop.f32.mrf.mxu0
        %v1439 = vadd.f32 %v910, %v1438
        %1440 = vmatprep.mubr.bf16.mxu0 %v826
        %1441 = vmatmul.mubr.bf16.gmra.mxu0 %v825
        %v1442 = vpop.f32.mrf.mxu0
        %v1443 = vadd.f32 %v906, %v1442
        %v1444 = vpop.f32.mrf.mxu0
        %v1445 = vadd.f32 %v910, %v1444
        %v1446 = vpop.f32.mrf.mxu0
        %v1447 = vadd.f32 %v906, %v1446
        %v1448 = vpop.f32.mrf.mxu0
        %v1449 = vadd.f32 %v910, %v1448
        %1450 = vmatprep.mubr.bf16.mxu0 %v828
        %1451 = vmatmul.mubr.bf16.gmra.mxu0 %v827
        %v1452 = vpop.f32.mrf.mxu0
        %v1453 = vadd.f32 %v906, %v1452
        %v1454 = vpop.f32.mrf.mxu0
        %v1455 = vadd.f32 %v910, %v1454
        %v1456 = vpop.f32.mrf.mxu0
        %v1457 = vadd.f32 %v906, %v1456
        %v1458 = vpop.f32.mrf.mxu0
        %v1459 = vadd.f32 %v910, %v1458
        %1460 = vdwg.mxu0
        %v1461 = vmax.f32 %v1270, 0.0
        %v1462 = vmax.f32 %v1272, 0.0
        %v1463 = vmax.f32 %v1383, 0.0
        %v1464 = vmax.f32 %v1385, 0.0
        %v1465 = vmax.f32 %v1274, 0.0
        %v1466 = vmax.f32 %v1276, 0.0
        %v1467 = vmax.f32 %v1387, 0.0
        %v1468 = vmax.f32 %v1389, 0.0
        %v1469 = vmax.f32 %v1280, 0.0
        %v1470 = vmax.f32 %v1282, 0.0
        %v1471 = vmax.f32 %v1393, 0.0
        %v1472 = vmax.f32 %v1395, 0.0
        %v1473 = vmax.f32 %v1284, 0.0
        %v1474 = vmax.f32 %v1286, 0.0
        %v1475 = vmax.f32 %v1397, 0.0
        %v1476 = vmax.f32 %v1399, 0.0
        %v1477 = vmax.f32 %v1290, 0.0
        %v1478 = vmax.f32 %v1292, 0.0
        %v1479 = vmax.f32 %v1403, 0.0
        %v1480 = vmax.f32 %v1405, 0.0
        %v1481 = vmax.f32 %v1294, 0.0
        %v1482 = vmax.f32 %v1296, 0.0
        %v1483 = vmax.f32 %v1407, 0.0
        %v1484 = vmax.f32 %v1409, 0.0
        %v1485 = vmax.f32 %v1300, 0.0
        %v1486 = vmax.f32 %v1302, 0.0
        %v1487 = vmax.f32 %v1413, 0.0
        %v1488 = vmax.f32 %v1415, 0.0
        %v1489 = vmax.f32 %v1304, 0.0
        %v1490 = vmax.f32 %v1306, 0.0
        %v1491 = vmax.f32 %v1417, 0.0
        %v1492 = vmax.f32 %v1419, 0.0
        %v1493 = vmax.f32 %v1310, 0.0
        %v1494 = vmax.f32 %v1312, 0.0
        %v1495 = vmax.f32 %v1423, 0.0
        %v1496 = vmax.f32 %v1425, 0.0
        %v1497 = vmax.f32 %v1314, 0.0
        %v1498 = vmax.f32 %v1316, 0.0
        %v1499 = vmax.f32 %v1427, 0.0
        %v1500 = vmax.f32 %v1429, 0.0
        %v1501 = vmax.f32 %v1320, 0.0
        %v1502 = vmax.f32 %v1322, 0.0
        %v1503 = vmax.f32 %v1433, 0.0
        %v1504 = vmax.f32 %v1435, 0.0
        %v1505 = vmax.f32 %v1324, 0.0
        %v1506 = vmax.f32 %v1326, 0.0
        %v1507 = vmax.f32 %v1437, 0.0
        %v1508 = vmax.f32 %v1439, 0.0
        %v1509 = vmax.f32 %v1330, 0.0
        %v1510 = vmax.f32 %v1332, 0.0
        %v1511 = vmax.f32 %v1443, 0.0
        %v1512 = vmax.f32 %v1445, 0.0
        %v1513 = vmax.f32 %v1334, 0.0
        %v1514 = vmax.f32 %v1336, 0.0
        %v1515 = vmax.f32 %v1447, 0.0
        %v1516 = vmax.f32 %v1449, 0.0
        %v1517 = vmax.f32 %v1340, 0.0
        %v1518 = vmax.f32 %v1342, 0.0
        %v1519 = vmax.f32 %v1453, 0.0
        %v1520 = vmax.f32 %v1455, 0.0
        %v1521 = vmax.f32 %v1344, 0.0
        %v1522 = vmax.f32 %v1346, 0.0
        %v1523 = vmax.f32 %v1457, 0.0
        %v1524 = vmax.f32 %v1459, 0.0
        %v1525 = vpack.c.bf16 %v1465, %v1461
        %v1526 = vpack.c.bf16 %v1466, %v1462
        %v1527 = vpack.c.bf16 %v1467, %v1463
        %v1528 = vpack.c.bf16 %v1468, %v1464
        %v1529 = vpack.c.bf16 %v1473, %v1469
        %v1530 = vpack.c.bf16 %v1474, %v1470
        %v1531 = vpack.c.bf16 %v1475, %v1471
        %v1532 = vpack.c.bf16 %v1476, %v1472
        %v1533 = vpack.c.bf16 %v1481, %v1477
        %v1534 = vpack.c.bf16 %v1482, %v1478
        %v1535 = vpack.c.bf16 %v1483, %v1479
        %v1536 = vpack.c.bf16 %v1484, %v1480
        %v1537 = vpack.c.bf16 %v1489, %v1485
        %v1538 = vpack.c.bf16 %v1490, %v1486
        %v1539 = vpack.c.bf16 %v1491, %v1487
        %v1540 = vpack.c.bf16 %v1492, %v1488
        %v1541 = vpack.c.bf16 %v1497, %v1493
        %v1542 = vpack.c.bf16 %v1498, %v1494
        %v1543 = vpack.c.bf16 %v1499, %v1495
        %v1544 = vpack.c.bf16 %v1500, %v1496
        %v1545 = vpack.c.bf16 %v1505, %v1501
        %v1546 = vpack.c.bf16 %v1506, %v1502
        %v1547 = vpack.c.bf16 %v1507, %v1503
        %v1548 = vpack.c.bf16 %v1508, %v1504
        %v1549 = vpack.c.bf16 %v1513, %v1509
        %v1550 = vpack.c.bf16 %v1514, %v1510
        %v1551 = vpack.c.bf16 %v1515, %v1511
        %v1552 = vpack.c.bf16 %v1516, %v1512
        %v1553 = vpack.c.bf16 %v1521, %v1517
        %v1554 = vpack.c.bf16 %v1522, %v1518
        %v1555 = vpack.c.bf16 %v1523, %v1519
        %v1556 = vpack.c.bf16 %v1524, %v1520
        %v1557 = vld [vmem:[%s7] sm:$0xf]
        %v1558 = vld [vmem:[%s7 + $0x4] sm:$0xf]
        %v1559 = vld [vmem:[%s7 + $0x8] sm:$0xf]
        %v1560 = vld [vmem:[%s7 + $0xc] sm:$0xf]
        %v1561 = vld [vmem:[%s7 + $0x10] sm:$0xf]
        %v1562 = vld [vmem:[%s7 + $0x14] sm:$0xf]
        %v1563 = vld [vmem:[%s7 + $0x18] sm:$0xf]
        %v1564 = vld [vmem:[%s7 + $0x1c] sm:$0xf]
        %v1565 = vld [vmem:[%s7 + $0x20] sm:$0xf]
        %v1566 = vld [vmem:[%s7 + $0x24] sm:$0xf]
        %v1567 = vld [vmem:[%s7 + $0x28] sm:$0xf]
        %v1568 = vld [vmem:[%s7 + $0x2c] sm:$0xf]
        %v1569 = vld [vmem:[%s7 + $0x30] sm:$0xf]
        %v1570 = vld [vmem:[%s7 + $0x34] sm:$0xf]
        %v1571 = vld [vmem:[%s7 + $0x38] sm:$0xf]
        %v1572 = vld [vmem:[%s7 + $0x3c] sm:$0xf]
        %v1573 = vld [vmem:[%s7 + $0x40] sm:$0xf]
        %v1574 = vld [vmem:[%s7 + $0x44] sm:$0xf]
        %v1575 = vld [vmem:[%s7 + $0x48] sm:$0xf]
        %v1576 = vld [vmem:[%s7 + $0x4c] sm:$0xf]
        %v1577 = vld [vmem:[%s7 + $0x50] sm:$0xf]
        %v1578 = vld [vmem:[%s7 + $0x54] sm:$0xf]
        %v1579 = vld [vmem:[%s7 + $0x58] sm:$0xf]
        %v1580 = vld [vmem:[%s7 + $0x5c] sm:$0xf]
        %v1581 = vld [vmem:[%s7 + $0x60] sm:$0xf]
        %v1582 = vld [vmem:[%s7 + $0x64] sm:$0xf]
        %v1583 = vld [vmem:[%s7 + $0x68] sm:$0xf]
        %v1584 = vld [vmem:[%s7 + $0x6c] sm:$0xf]
        %v1585 = vld [vmem:[%s7 + $0x70] sm:$0xf]
        %v1586 = vld [vmem:[%s7 + $0x74] sm:$0xf]
        %v1587 = vld [vmem:[%s7 + $0x78] sm:$0xf]
        %v1588 = vld [vmem:[%s7 + $0x7c] sm:$0xf]
        %v1589 = vld [vmem:[%s7 + $0x80] sm:$0xf]
        %v1590 = vld [vmem:[%s7 + $0x84] sm:$0xf]
        %v1591 = vld [vmem:[%s7 + $0x88] sm:$0xf]
        %v1592 = vld [vmem:[%s7 + $0x8c] sm:$0xf]
        %v1593 = vld [vmem:[%s7 + $0x90] sm:$0xf]
        %v1594 = vld [vmem:[%s7 + $0x94] sm:$0xf]
        %v1595 = vld [vmem:[%s7 + $0x98] sm:$0xf]
        %v1596 = vld [vmem:[%s7 + $0x9c] sm:$0xf]
        %v1597 = vld [vmem:[%s7 + $0xa0] sm:$0xf]
        %v1598 = vld [vmem:[%s7 + $0xa4] sm:$0xf]
        %v1599 = vld [vmem:[%s7 + $0xa8] sm:$0xf]
        %v1600 = vld [vmem:[%s7 + $0xac] sm:$0xf]
        %v1601 = vld [vmem:[%s7 + $0xb0] sm:$0xf]
        %v1602 = vld [vmem:[%s7 + $0xb4] sm:$0xf]
        %v1603 = vld [vmem:[%s7 + $0xb8] sm:$0xf]
        %v1604 = vld [vmem:[%s7 + $0xbc] sm:$0xf]
        %v1605 = vld [vmem:[%s7 + $0xc0] sm:$0xf]
        %v1606 = vld [vmem:[%s7 + $0xc4] sm:$0xf]
        %v1607 = vld [vmem:[%s7 + $0xc8] sm:$0xf]
        %v1608 = vld [vmem:[%s7 + $0xcc] sm:$0xf]
        %v1609 = vld [vmem:[%s7 + $0xd0] sm:$0xf]
        %v1610 = vld [vmem:[%s7 + $0xd4] sm:$0xf]
        %v1611 = vld [vmem:[%s7 + $0xd8] sm:$0xf]
        %v1612 = vld [vmem:[%s7 + $0xdc] sm:$0xf]
        %v1613 = vld [vmem:[%s7 + $0xe0] sm:$0xf]
        %v1614 = vld [vmem:[%s7 + $0xe4] sm:$0xf]
        %v1615 = vld [vmem:[%s7 + $0xe8] sm:$0xf]
        %v1616 = vld [vmem:[%s7 + $0xec] sm:$0xf]
        %v1617 = vld [vmem:[%s7 + $0xf0] sm:$0xf]
        %v1618 = vld [vmem:[%s7 + $0xf4] sm:$0xf]
        %v1619 = vld [vmem:[%s7 + $0xf8] sm:$0xf]
        %v1620 = vld [vmem:[%s7 + $0xfc] sm:$0xf]
        %v1621 = vld [vmem:[%s8] sm:$0x1]
        %v1623 = vlaneseq
        %v1624 = vshrl.u32 %v1623, 7
        %v1625 = vsub.s32 0, %v1624
        %v1626 = vrot.slane %v1621, %v1625
        %v1692 = vunpack.c.l.b16 %v1557
        %v1693 = vunpack.c.l.b16 %v1558
        %v1694 = vunpack.c.l.b16 %v1559
        %v1695 = vunpack.c.l.b16 %v1560
        %v1696 = vunpack.c.l.b16 %v1561
        %v1697 = vunpack.c.l.b16 %v1562
        %v1698 = vunpack.c.l.b16 %v1563
        %v1699 = vunpack.c.l.b16 %v1564
        %v1700 = vunpack.c.l.b16 %v1565
        %v1701 = vunpack.c.l.b16 %v1566
        %v1702 = vunpack.c.l.b16 %v1567
        %v1703 = vunpack.c.l.b16 %v1568
        %v1704 = vunpack.c.l.b16 %v1569
        %v1705 = vunpack.c.l.b16 %v1570
        %v1706 = vunpack.c.l.b16 %v1571
        %v1707 = vunpack.c.l.b16 %v1572
        %v1708 = vunpack.c.l.b16 %v1573
        %v1709 = vunpack.c.l.b16 %v1574
        %v1710 = vunpack.c.l.b16 %v1575
        %v1711 = vunpack.c.l.b16 %v1576
        %v1712 = vunpack.c.l.b16 %v1577
        %v1713 = vunpack.c.l.b16 %v1578
        %v1714 = vunpack.c.l.b16 %v1579
        %v1715 = vunpack.c.l.b16 %v1580
        %v1716 = vunpack.c.l.b16 %v1581
        %v1717 = vunpack.c.l.b16 %v1582
        %v1718 = vunpack.c.l.b16 %v1583
        %v1719 = vunpack.c.l.b16 %v1584
        %v1720 = vunpack.c.l.b16 %v1585
        %v1721 = vunpack.c.l.b16 %v1586
        %v1722 = vunpack.c.l.b16 %v1587
        %v1723 = vunpack.c.l.b16 %v1588
        %v1724 = vunpack.c.l.b16 %v1589
        %v1725 = vunpack.c.l.b16 %v1590
        %v1726 = vunpack.c.l.b16 %v1591
        %v1727 = vunpack.c.l.b16 %v1592
        %v1728 = vunpack.c.l.b16 %v1593
        %v1729 = vunpack.c.l.b16 %v1594
        %v1730 = vunpack.c.l.b16 %v1595
        %v1731 = vunpack.c.l.b16 %v1596
        %v1732 = vunpack.c.l.b16 %v1597
        %v1733 = vunpack.c.l.b16 %v1598
        %v1734 = vunpack.c.l.b16 %v1599
        %v1735 = vunpack.c.l.b16 %v1600
        %v1736 = vunpack.c.l.b16 %v1601
        %v1737 = vunpack.c.l.b16 %v1602
        %v1738 = vunpack.c.l.b16 %v1603
        %v1739 = vunpack.c.l.b16 %v1604
        %v1740 = vunpack.c.l.b16 %v1605
        %v1741 = vunpack.c.l.b16 %v1606
        %v1742 = vunpack.c.l.b16 %v1607
        %v1743 = vunpack.c.l.b16 %v1608
        %v1744 = vunpack.c.l.b16 %v1609
        %v1745 = vunpack.c.l.b16 %v1610
        %v1746 = vunpack.c.l.b16 %v1611
        %v1747 = vunpack.c.l.b16 %v1612
        %v1748 = vunpack.c.l.b16 %v1613
        %v1749 = vunpack.c.l.b16 %v1614
        %v1750 = vunpack.c.l.b16 %v1615
        %v1751 = vunpack.c.l.b16 %v1616
        %v1752 = vunpack.c.l.b16 %v1617
        %v1753 = vunpack.c.l.b16 %v1618
        %v1754 = vunpack.c.l.b16 %v1619
        %v1755 = vunpack.c.l.b16 %v1620
        %v1756 = vpack.c.b16 %v1693, %v1692
        %v1757 = vpack.c.b16 %v1695, %v1694
        %v1758 = vpack.c.b16 %v1697, %v1696
        %v1759 = vpack.c.b16 %v1699, %v1698
        %v1760 = vpack.c.b16 %v1701, %v1700
        %v1761 = vpack.c.b16 %v1703, %v1702
        %v1762 = vpack.c.b16 %v1705, %v1704
        %v1763 = vpack.c.b16 %v1707, %v1706
        %v1764 = vpack.c.b16 %v1709, %v1708
        %v1765 = vpack.c.b16 %v1711, %v1710
        %v1766 = vpack.c.b16 %v1713, %v1712
        %v1767 = vpack.c.b16 %v1715, %v1714
        %v1768 = vpack.c.b16 %v1717, %v1716
        %v1769 = vpack.c.b16 %v1719, %v1718
        %v1770 = vpack.c.b16 %v1721, %v1720
        %v1771 = vpack.c.b16 %v1723, %v1722
        %v1772 = vpack.c.b16 %v1725, %v1724
        %v1773 = vpack.c.b16 %v1727, %v1726
        %v1774 = vpack.c.b16 %v1729, %v1728
        %v1775 = vpack.c.b16 %v1731, %v1730
        %v1776 = vpack.c.b16 %v1733, %v1732
        %v1777 = vpack.c.b16 %v1735, %v1734
        %v1778 = vpack.c.b16 %v1737, %v1736
        %v1779 = vpack.c.b16 %v1739, %v1738
        %v1780 = vpack.c.b16 %v1741, %v1740
        %v1781 = vpack.c.b16 %v1743, %v1742
        %v1782 = vpack.c.b16 %v1745, %v1744
        %v1783 = vpack.c.b16 %v1747, %v1746
        %v1784 = vpack.c.b16 %v1749, %v1748
        %v1785 = vpack.c.b16 %v1751, %v1750
        %v1786 = vpack.c.b16 %v1753, %v1752
        %v1787 = vpack.c.b16 %v1755, %v1754
        %1820 = vmatprep.subr.bf16.mxu0 0
        %1821 = vmatpush1.bf16.msra.mxu0 %v1763
        %1822 = vmatprep.subr.bf16.mxu0 0
        %1823 = vmatpush1.bf16.msra.mxu0 %v1762
        %1824 = vmatprep.subr.bf16.mxu0 0
        %1825 = vmatpush1.bf16.msra.mxu0 %v1761
        %1826 = vmatprep.subr.bf16.mxu0 0
        %1827 = vmatpush1.bf16.msra.mxu0 %v1760
        %1828 = vmatprep.subr.bf16.mxu0 0
        %1829 = vmatpush1.bf16.msra.mxu0 %v1759
        %1830 = vmatprep.subr.bf16.mxu0 0
        %1831 = vmatpush1.bf16.msra.mxu0 %v1758
        %1832 = vmatprep.subr.bf16.mxu0 0
        %1833 = vmatpush1.bf16.msra.mxu0 %v1757
        %1834 = vmatprep.subr.bf16.mxu0 0
        %1835 = vmatpush1.bf16.msra.mxu0 %v1756
        %1836 = vmatprep.subr.bf16.mxu0 0
        %1837 = vmatpush2.bf16.msra.mxu0 %v1771
        %1838 = vmatprep.subr.bf16.mxu0 0
        %1839 = vmatpush2.bf16.msra.mxu0 %v1770
        %1840 = vmatprep.subr.bf16.mxu0 0
        %1841 = vmatpush2.bf16.msra.mxu0 %v1769
        %1842 = vmatprep.subr.bf16.mxu0 0
        %1843 = vmatpush2.bf16.msra.mxu0 %v1768
        %1844 = vmatprep.subr.bf16.mxu0 0
        %1845 = vmatpush2.bf16.msra.mxu0 %v1767
        %1846 = vmatprep.subr.bf16.mxu0 0
        %1847 = vmatpush2.bf16.msra.mxu0 %v1766
        %1848 = vmatprep.subr.bf16.mxu0 0
        %1849 = vmatpush2.bf16.msra.mxu0 %v1765
        %1850 = vmatprep.subr.bf16.mxu0 0
        %1851 = vmatpush2.bf16.msra.mxu0 %v1764
        %1852 = vmatprep.mubr.bf16.mxu0 %v1526
        %1853 = vmatmul.mubr.bf16.gmra.mxu0 %v1525
        %v1854 = vpop.f32.mrf.mxu0
        %v1855 = vadd.f32 %v1626, %v1854
        %v1856 = vpop.f32.mrf.mxu0
        %v1857 = vpop.f32.mrf.mxu0
        %v1858 = vadd.f32 %v1626, %v1857
        %v1859 = vpop.f32.mrf.mxu0
        %1860 = vmatprep.mubr.bf16.mxu0 %v1530
        %1861 = vmatmul.mubr.bf16.gmra.mxu0 %v1529
        %v1862 = vpop.f32.mrf.mxu0
        %v1863 = vadd.f32 %v1626, %v1862
        %v1864 = vpop.f32.mrf.mxu0
        %v1865 = vpop.f32.mrf.mxu0
        %v1866 = vadd.f32 %v1626, %v1865
        %v1867 = vpop.f32.mrf.mxu0
        %1868 = vmatprep.mubr.bf16.mxu0 %v1534
        %1869 = vmatmul.mubr.bf16.gmra.mxu0 %v1533
        %v1870 = vpop.f32.mrf.mxu0
        %v1871 = vadd.f32 %v1626, %v1870
        %v1872 = vpop.f32.mrf.mxu0
        %v1873 = vpop.f32.mrf.mxu0
        %v1874 = vadd.f32 %v1626, %v1873
        %v1875 = vpop.f32.mrf.mxu0
        %1876 = vmatprep.mubr.bf16.mxu0 %v1538
        %1877 = vmatmul.mubr.bf16.gmra.mxu0 %v1537
        %v1878 = vpop.f32.mrf.mxu0
        %v1879 = vadd.f32 %v1626, %v1878
        %v1880 = vpop.f32.mrf.mxu0
        %v1881 = vpop.f32.mrf.mxu0
        %v1882 = vadd.f32 %v1626, %v1881
        %v1883 = vpop.f32.mrf.mxu0
        %1884 = vmatprep.mubr.bf16.mxu0 %v1542
        %1885 = vmatmul.mubr.bf16.gmra.mxu0 %v1541
        %v1886 = vpop.f32.mrf.mxu0
        %v1887 = vadd.f32 %v1626, %v1886
        %v1888 = vpop.f32.mrf.mxu0
        %v1889 = vpop.f32.mrf.mxu0
        %v1890 = vadd.f32 %v1626, %v1889
        %v1891 = vpop.f32.mrf.mxu0
        %1892 = vmatprep.mubr.bf16.mxu0 %v1546
        %1893 = vmatmul.mubr.bf16.gmra.mxu0 %v1545
        %v1894 = vpop.f32.mrf.mxu0
        %v1895 = vadd.f32 %v1626, %v1894
        %v1896 = vpop.f32.mrf.mxu0
        %v1897 = vpop.f32.mrf.mxu0
        %v1898 = vadd.f32 %v1626, %v1897
        %v1899 = vpop.f32.mrf.mxu0
        %1900 = vmatprep.mubr.bf16.mxu0 %v1550
        %1901 = vmatmul.mubr.bf16.gmra.mxu0 %v1549
        %v1902 = vpop.f32.mrf.mxu0
        %v1903 = vadd.f32 %v1626, %v1902
        %v1904 = vpop.f32.mrf.mxu0
        %v1905 = vpop.f32.mrf.mxu0
        %v1906 = vadd.f32 %v1626, %v1905
        %v1907 = vpop.f32.mrf.mxu0
        %1908 = vmatprep.mubr.bf16.mxu0 %v1554
        %1909 = vmatmul.mubr.bf16.gmra.mxu0 %v1553
        %v1910 = vpop.f32.mrf.mxu0
        %v1911 = vadd.f32 %v1626, %v1910
        %v1912 = vpop.f32.mrf.mxu0
        %v1913 = vpop.f32.mrf.mxu0
        %v1914 = vadd.f32 %v1626, %v1913
        %v1915 = vpop.f32.mrf.mxu0
        %1916 = vdwg.mxu0
        %1917 = vmatprep.subr.bf16.mxu0 0
        %1918 = vmatpush1.bf16.msra.mxu0 %v1779
        %1919 = vmatprep.subr.bf16.mxu0 0
        %1920 = vmatpush1.bf16.msra.mxu0 %v1778
        %1921 = vmatprep.subr.bf16.mxu0 0
        %1922 = vmatpush1.bf16.msra.mxu0 %v1777
        %1923 = vmatprep.subr.bf16.mxu0 0
        %1924 = vmatpush1.bf16.msra.mxu0 %v1776
        %1925 = vmatprep.subr.bf16.mxu0 0
        %1926 = vmatpush1.bf16.msra.mxu0 %v1775
        %1927 = vmatprep.subr.bf16.mxu0 0
        %1928 = vmatpush1.bf16.msra.mxu0 %v1774
        %1929 = vmatprep.subr.bf16.mxu0 0
        %1930 = vmatpush1.bf16.msra.mxu0 %v1773
        %1931 = vmatprep.subr.bf16.mxu0 0
        %1932 = vmatpush1.bf16.msra.mxu0 %v1772
        %1933 = vmatprep.subr.bf16.mxu0 0
        %1934 = vmatpush2.bf16.msra.mxu0 %v1787
        %1935 = vmatprep.subr.bf16.mxu0 0
        %1936 = vmatpush2.bf16.msra.mxu0 %v1786
        %1937 = vmatprep.subr.bf16.mxu0 0
        %1938 = vmatpush2.bf16.msra.mxu0 %v1785
        %1939 = vmatprep.subr.bf16.mxu0 0
        %1940 = vmatpush2.bf16.msra.mxu0 %v1784
        %1941 = vmatprep.subr.bf16.mxu0 0
        %1942 = vmatpush2.bf16.msra.mxu0 %v1783
        %1943 = vmatprep.subr.bf16.mxu0 0
        %1944 = vmatpush2.bf16.msra.mxu0 %v1782
        %1945 = vmatprep.subr.bf16.mxu0 0
        %1946 = vmatpush2.bf16.msra.mxu0 %v1781
        %1947 = vmatprep.subr.bf16.mxu0 0
        %1948 = vmatpush2.bf16.msra.mxu0 %v1780
        %1949 = vmatprep.mubr.bf16.mxu0 %v1528
        %1950 = vmatmul.mubr.bf16.gmra.mxu0 %v1527
        %v1951 = vpop.f32.mrf.mxu0
        %v1952 = vadd.f32 %v1855, %v1951
        %v1953 = vpop.f32.mrf.mxu0
        %v1954 = vpop.f32.mrf.mxu0
        %v1955 = vadd.f32 %v1858, %v1954
        %v1956 = vpop.f32.mrf.mxu0
        %1957 = vmatprep.mubr.bf16.mxu0 %v1532
        %1958 = vmatmul.mubr.bf16.gmra.mxu0 %v1531
        %v1959 = vpop.f32.mrf.mxu0
        %v1960 = vadd.f32 %v1863, %v1959
        %v1961 = vpop.f32.mrf.mxu0
        %v1962 = vpop.f32.mrf.mxu0
        %v1963 = vadd.f32 %v1866, %v1962
        %v1964 = vpop.f32.mrf.mxu0
        %1965 = vmatprep.mubr.bf16.mxu0 %v1536
        %1966 = vmatmul.mubr.bf16.gmra.mxu0 %v1535
        %v1967 = vpop.f32.mrf.mxu0
        %v1968 = vadd.f32 %v1871, %v1967
        %v1969 = vpop.f32.mrf.mxu0
        %v1970 = vpop.f32.mrf.mxu0
        %v1971 = vadd.f32 %v1874, %v1970
        %v1972 = vpop.f32.mrf.mxu0
        %1973 = vmatprep.mubr.bf16.mxu0 %v1540
        %1974 = vmatmul.mubr.bf16.gmra.mxu0 %v1539
        %v1975 = vpop.f32.mrf.mxu0
        %v1976 = vadd.f32 %v1879, %v1975
        %v1977 = vpop.f32.mrf.mxu0
        %v1978 = vpop.f32.mrf.mxu0
        %v1979 = vadd.f32 %v1882, %v1978
        %v1980 = vpop.f32.mrf.mxu0
        %1981 = vmatprep.mubr.bf16.mxu0 %v1544
        %1982 = vmatmul.mubr.bf16.gmra.mxu0 %v1543
        %v1983 = vpop.f32.mrf.mxu0
        %v1984 = vadd.f32 %v1887, %v1983
        %v1985 = vpop.f32.mrf.mxu0
        %v1986 = vpop.f32.mrf.mxu0
        %v1987 = vadd.f32 %v1890, %v1986
        %v1988 = vpop.f32.mrf.mxu0
        %1989 = vmatprep.mubr.bf16.mxu0 %v1548
        %1990 = vmatmul.mubr.bf16.gmra.mxu0 %v1547
        %v1991 = vpop.f32.mrf.mxu0
        %v1992 = vadd.f32 %v1895, %v1991
        %v1993 = vpop.f32.mrf.mxu0
        %v1994 = vpop.f32.mrf.mxu0
        %v1995 = vadd.f32 %v1898, %v1994
        %v1996 = vpop.f32.mrf.mxu0
        %1997 = vmatprep.mubr.bf16.mxu0 %v1552
        %1998 = vmatmul.mubr.bf16.gmra.mxu0 %v1551
        %v1999 = vpop.f32.mrf.mxu0
        %v2000 = vadd.f32 %v1903, %v1999
        %v2001 = vpop.f32.mrf.mxu0
        %v2002 = vpop.f32.mrf.mxu0
        %v2003 = vadd.f32 %v1906, %v2002
        %v2004 = vpop.f32.mrf.mxu0
        %2005 = vmatprep.mubr.bf16.mxu0 %v1556
        %2006 = vmatmul.mubr.bf16.gmra.mxu0 %v1555
        %v2007 = vpop.f32.mrf.mxu0
        %v2008 = vadd.f32 %v1911, %v2007
        %v2009 = vpop.f32.mrf.mxu0
        %v2010 = vpop.f32.mrf.mxu0
        %v2011 = vadd.f32 %v1914, %v2010
        %v2012 = vpop.f32.mrf.mxu0
        %2013 = vdwg.mxu0
        %2014 = vst [vmem:[%s364] sm:$0xff] %v1952
        %2015 = vst [vmem:[%s364 + $0x8] sm:$0xff] %v1955
        %2016 = vst [vmem:[%s364 + $0x10] sm:$0xff] %v1960
        %2017 = vst [vmem:[%s364 + $0x18] sm:$0xff] %v1963
        %2018 = vst [vmem:[%s364 + $0x20] sm:$0xff] %v1968
        %2019 = vst [vmem:[%s364 + $0x28] sm:$0xff] %v1971
        %2020 = vst [vmem:[%s364 + $0x30] sm:$0xff] %v1976
        %2021 = vst [vmem:[%s364 + $0x38] sm:$0xff] %v1979
        %2022 = vst [vmem:[%s364 + $0x40] sm:$0xff] %v1984
        %2023 = vst [vmem:[%s364 + $0x48] sm:$0xff] %v1987
        %2024 = vst [vmem:[%s364 + $0x50] sm:$0xff] %v1992
        %2025 = vst [vmem:[%s364 + $0x58] sm:$0xff] %v1995
        %2026 = vst [vmem:[%s364 + $0x60] sm:$0xff] %v2000
        %2027 = vst [vmem:[%s364 + $0x68] sm:$0xff] %v2003
        %2028 = vst [vmem:[%s364 + $0x70] sm:$0xff] %v2008
        %2029 = vst [vmem:[%s364 + $0x78] sm:$0xff] %v2011
        %s2030 = smul.u32 16, %s22
        %p2031 = scmp.lt.s32.totalorder %s2030, 31
        %s2032 = scalar_select %p2031, %s2030, 31
        %s2033 = smul.addr %s2032, 8
        %s2034 = scalar_lea.vmem %s9, %s2033
        // Predicated region
        $region65: #{net_forward.1} parent=55 // pred_check
          %p2035 = pneg %p234
        $region66: #{net_forward.1} parent=55 // pred_check_branch
          %2037 = sbr.rel (%p2035) target = $region68
        $region67: #{net_forward.1} parent=55 // pred_region
          %s2038 = smul.u32 16, %s22
        $region68: #{net_forward.1} parent=55 // pred_fallthru
          _
      $region56: #{net_forward.1} parent=5 // pred_fallthru
        _
      %p2039 = scmp.le.s32.totalorder 2, %s17
      // Predicated region
      $region69: #{net_forward.1} parent=5 // pred_check
        %p2040 = pneg %p2039
      $region70: #{net_forward.1} parent=5 // pred_check_branch
        %2042 = sbr.rel (%p2040) target = $region72
      $region71: #{net_forward.1} parent=5 // pred_region
        %s2043 = ssub.s32 %s17, 2
        // Predicated region
        $region73: #{net_forward.1} parent=71 // pred_check
          %p2044 = pneg %p240
        $region74: #{net_forward.1} parent=71 // pred_check_branch
          %2046 = sbr.rel (%p2044) target = $region76
        $region75: #{net_forward.1} parent=71 // pred_region
          %s2047 = smul.u32 16, %s23
          %p2048 = scmp.lt.s32.totalorder %s2047, 31
          %s2049 = scalar_select %p2048, %s2047, 31
          %s2050 = smul.addr %s2049, 8
          %s2051 = scalar_lea.vmem %s9, %s2050
        $region76: #{net_forward.1} parent=71 // pred_fallthru
          _
      $region72: #{net_forward.1} parent=5 // pred_fallthru
        _
    $region6: #{net_forward.1} parent=1 // loop_footer
      %s21 = sadd.s32 1, %s17
    $region7: #{net_forward.1} parent=1 // loop_footer_branch
      %16 = sbr.rel target = $region3
    $region8: #{net_forward.1} parent=1 // loop_exit
      _
    %2052 = vsyncpa [#allocation3], 1
    %s2053 = scalar_lea.sflag [#allocation3], 1
    %2054 = vsyncpa %s2053, 1
    %2055 = vsyncpa [#allocation5], 1

</llo_original>
